<compile_context>
chip_gen: v7x
topology: tpu7x:2x2x1
jax: 0.10.0
libtpu: 0.0.40
codegen_flags: <defaults>
</compile_context>

<pallas_src>
import functools

import numpy as np
import jax
import jax.numpy as jnp
from jax import lax
from jax.experimental import pallas as pl
from jax.experimental.pallas import tpu as pltpu

EPS = 1e-5


# ----------------------------- fused Pallas kernels -------------------------

def _unit_s1_kernel(x_ref, w1_ref, b1_ref, wd_ref, bd_ref, w2_ref, b2_ref,
                    o_ref, pad_ref, *, h, w):
    # x_ref : (1, H*W, Cin) bf16                (one NHWC image, spatial flat)
    # w1_ref: (Cin, Mid)    bf16  block-diag, BN1 scale + channel shuffle folded
    # b1_ref: (1, Mid)      f32
    # wd_ref: (9, Mid)      f32   depthwise taps, BNd scale folded
    # bd_ref: (1, Mid)      f32
    # w2_ref: (Mid, Cout)   bf16  block-diag, BN2 scale folded
    # b2_ref: (1, Cout)     f32
    # o_ref : (1, H*W, Cout) f32
    # pad_ref: (H+2, W+2, Mid) f32 VMEM scratch (zero-padded DW input)
    mid = w1_ref.shape[1]
    x2d = x_ref[0]                                         # (H*W, Cin) bf16

    # GConv1 (1x1 grouped, dense block-diagonal) + BN + ReLU on the MXU.
    h1 = jnp.dot(x2d, w1_ref[...], preferred_element_type=jnp.float32)
    h1 = jnp.maximum(h1 + b1_ref[...], 0.0)                # (H*W, Mid) f32

    # Depthwise 3x3 / pad=1 + BN: pad into VMEM scratch, 9 shifted VPU FMAs.
    pad_ref[...] = jnp.zeros_like(pad_ref)
    pad_ref[1:h + 1, 1:w + 1, :] = h1.reshape(h, w, mid)
    acc = jnp.zeros((h, w, mid), jnp.float32)
    for dy in range(3):
        for dx in range(3):
            acc = acc + pad_ref[dy:dy + h, dx:dx + w, :] * wd_ref[dy * 3 + dx]
    h2 = acc + bd_ref[0]                                   # BN bias, no ReLU

    # GConv2 + BN + residual add + final ReLU (Cout == Cin when stride == 1).
    y = jnp.dot(h2.reshape(h * w, mid).astype(w2_ref.dtype), w2_ref[...],
                preferred_element_type=jnp.float32)
    y = y + b2_ref[...] + x2d.astype(jnp.float32)
    o_ref[0] = jnp.maximum(y, 0.0).astype(o_ref.dtype)


def _unit_s2_kernel(x_ref, w1_ref, b1_ref, wd_ref, bd_ref, w2_ref, b2_ref,
                    y_ref, sc_ref, pad_ref, padx_ref, *, h, w, ho, wo):
    # Same layout as the stride=1 kernel, plus:
    #   y_ref : (1, Ho*Wo, Cout-Cin) f32  main branch (already ReLU'ed)
    #   sc_ref: (1, Ho*Wo, Cin)      f32  avg-pool shortcut (already ReLU'ed)
    #   padx_ref: (H+2, W+2, Cin) f32 scratch for the shortcut pooling
    mid = w1_ref.shape[1]
    cin = x_ref.shape[2]
    x2d = x_ref[0]

    h1 = jnp.dot(x2d, w1_ref[...], preferred_element_type=jnp.float32)
    h1 = jnp.maximum(h1 + b1_ref[...], 0.0)

    # Depthwise 3x3 / stride 2: accumulate directly at output resolution using
    # strided taps (no full-resolution intermediate, no [::2, ::2] relayout).
    pad_ref[...] = jnp.zeros_like(pad_ref)
    pad_ref[1:h + 1, 1:w + 1, :] = h1.reshape(h, w, mid)
    acc = jnp.zeros((ho, wo, mid), jnp.float32)
    for dy in range(3):
        for dx in range(3):
            tap = pad_ref[pl.ds(dy, ho, 2), pl.ds(dx, wo, 2), :]
            acc = acc + tap * wd_ref[dy * 3 + dx]
    h2 = acc + bd_ref[0]

    y = jnp.dot(h2.reshape(ho * wo, mid).astype(w2_ref.dtype), w2_ref[...],
                preferred_element_type=jnp.float32)
    y_ref[0] = jnp.maximum(y + b2_ref[...], 0.0).astype(y_ref.dtype)

    # Shortcut: 3x3/s2 avg-pool (count_include_pad=True) + ReLU, fused here so
    # the input image is read from HBM exactly once.
    padx_ref[...] = jnp.zeros_like(padx_ref)
    padx_ref[1:h + 1, 1:w + 1, :] = x2d.astype(jnp.float32).reshape(h, w, cin)
    accs = jnp.zeros((ho, wo, cin), jnp.float32)
    for dy in range(3):
        for dx in range(3):
            accs = accs + padx_ref[pl.ds(dy, ho, 2), pl.ds(dx, wo, 2), :]
    sc = jnp.maximum(accs * (1.0 / 9.0), 0.0)
    sc_ref[0] = sc.reshape(ho * wo, cin).astype(sc_ref.dtype)


# ----------------------------- forward pass ---------------------------------

def shufflenet_unit_forward(x_nchw, kp, *, stride):
    n, cin, h, w = x_nchw.shape
    mid = kp['W1'].shape[1]
    cout = kp['W2'].shape[1]

    # NCHW -> NHWC (flattened spatial) + bf16 storage for the kernel.
    x = jnp.transpose(x_nchw, (0, 2, 3, 1)).astype(jnp.bfloat16)
    x = x.reshape(n, h * w, cin)

    weight_specs = [
        pl.BlockSpec((cin, mid), lambda i: (0, 0)),
        pl.BlockSpec((1, mid), lambda i: (0, 0)),
        pl.BlockSpec((9, mid), lambda i: (0, 0)),
        pl.BlockSpec((1, mid), lambda i: (0, 0)),
        pl.BlockSpec((mid, cout), lambda i: (0, 0)),
        pl.BlockSpec((1, cout), lambda i: (0, 0)),
    ]
    args = (x, kp['W1'], kp['b1'], kp['wd'], kp['bd'], kp['W2'], kp['b2'])

    if stride == 1:
        assert cout == cin, "stride=1 residual needs out_channels == in_channels"
        out = pl.pallas_call(
            functools.partial(_unit_s1_kernel, h=h, w=w),
            out_shape=jax.ShapeDtypeStruct((n, h * w, cout), jnp.float32),
            grid=(n,),
            in_specs=[pl.BlockSpec((1, h * w, cin), lambda i: (i, 0, 0))]
                     + weight_specs,
            out_specs=pl.BlockSpec((1, h * w, cout), lambda i: (i, 0, 0)),
            scratch_shapes=[pltpu.VMEM((h + 2, w + 2, mid), jnp.float32)],
            compiler_params=pltpu.CompilerParams(
                dimension_semantics=("parallel",)),
        )(*args)
        out = out.reshape(n, h, w, cout)
    else:
        ho = (h - 1) // 2 + 1
        wo = (w - 1) // 2 + 1
        y, sc = pl.pallas_call(
            functools.partial(_unit_s2_kernel, h=h, w=w, ho=ho, wo=wo),
            out_shape=(jax.ShapeDtypeStruct((n, ho * wo, cout), jnp.float32),
                       jax.ShapeDtypeStruct((n, ho * wo, cin), jnp.float32)),
            grid=(n,),
            in_specs=[pl.BlockSpec((1, h * w, cin), lambda i: (i, 0, 0))]
                     + weight_specs,
            out_specs=(pl.BlockSpec((1, ho * wo, cout), lambda i: (i, 0, 0)),
                       pl.BlockSpec((1, ho * wo, cin), lambda i: (i, 0, 0))),
            scratch_shapes=[pltpu.VMEM((h + 2, w + 2, mid), jnp.float32),
                            pltpu.VMEM((h + 2, w + 2, cin), jnp.float32)],
            compiler_params=pltpu.CompilerParams(
                dimension_semantics=("parallel",)),
        )(*args)
        out = jnp.concatenate([y.reshape(n, ho, wo, cout),
                               sc.reshape(n, ho, wo, cin)], axis=-1)
    return jnp.transpose(out, (0, 3, 1, 2))                # NHWC -> NCHW


# ----------------------------- parameter setup (glue) -----------------------

def _fold_bn(gamma, beta, mean, var):
    scale = gamma / jnp.sqrt(var + EPS)
    bias = beta - mean * scale
    return scale[None, :], bias[None, :]


def _dense_grouped_pw(w, groups):
    # w: PyTorch layout (Cout, Cin//groups) -> dense block-diagonal (Cin, Cout)
    cout, cin_g = w.shape
    cout_g = cout // groups
    cin = cin_g * groups
    dense = jnp.zeros((cin, cout), w.dtype)
    for g in range(groups):
        blk = w[g * cout_g:(g + 1) * cout_g, :].T
        dense = dense.at[g * cin_g:(g + 1) * cin_g,
                         g * cout_g:(g + 1) * cout_g].set(blk)
    return dense


def init_raw_params(key, groups, in_ch, mid_ch, out_ch, stride, first_pw=False):
    if stride == 2:
        out_ch = out_ch - in_ch
    g1 = 1 if first_pw else groups
    ks = jax.random.split(key, 6)

    def bn_params(k, c):
        k1, k2, k3, k4 = jax.random.split(k, 4)
        gamma = jax.random.uniform(k1, (c,), jnp.float32, 0.5, 1.5)
        beta = jax.random.normal(k2, (c,), jnp.float32) * 0.1
        mean = jax.random.normal(k3, (c,), jnp.float32) * 0.1
        var = jax.random.uniform(k4, (c,), jnp.float32, 0.5, 1.5)
        return gamma, beta, mean, var

    return dict(
        groups=groups, g1=g1, stride=stride,
        w1=jax.random.normal(ks[0], (mid_ch, in_ch // g1, 1, 1), jnp.float32) * 0.2,
        bn1=bn_params(ks[1], mid_ch),
        wd=jax.random.normal(ks[2], (mid_ch, 1, 3, 3), jnp.float32) * 0.2,
        bnd=bn_params(ks[3], mid_ch),
        w2=jax.random.normal(ks[4], (out_ch, mid_ch // groups, 1, 1), jnp.float32) * 0.2,
        bn2=bn_params(ks[5], out_ch),
    )


def build_kernel_params(raw):
    groups, g1 = raw['groups'], raw['g1']

    # GConv1: fold BN1 scale into the block-diagonal weight, then fold the
    # channel shuffle into a permutation of the output columns.
    W1 = _dense_grouped_pw(raw['w1'][:, :, 0, 0], g1)
    s1, b1 = _fold_bn(*raw['bn1'])
    W1 = W1 * s1
    mid = W1.shape[1]
    cpg = mid // groups
    src = jnp.arange(mid).reshape(groups, cpg).T.reshape(-1)
    W1, b1 = W1[:, src], b1[:, src]

    # Depthwise 3x3: fold BNd scale into the per-channel taps.
    wd = jnp.transpose(raw['wd'][:, 0, :, :], (1, 2, 0)).reshape(9, mid)
    sd, bd = _fold_bn(*raw['bnd'])
    wd = wd * sd

    # GConv2: fold BN2 scale into the block-diagonal weight.
    W2 = _dense_grouped_pw(raw['w2'][:, :, 0, 0], groups)
    s2, b2 = _fold_bn(*raw['bn2'])
    W2 = W2 * s2

    return dict(
        W1=W1.astype(jnp.bfloat16), b1=b1.astype(jnp.float32),
        wd=wd.astype(jnp.float32), bd=bd.astype(jnp.float32),
        W2=W2.astype(jnp.bfloat16), b2=b2.astype(jnp.float32),
    )


# ----------------------------- pure-JAX reference ---------------------------

def reference_forward(x, raw):
    groups, g1, stride = raw['groups'], raw['g1'], raw['stride']

    def bn(z, p):
        gamma, beta, mean, var = p
        inv = gamma / jnp.sqrt(var + EPS)
        return (z * inv[None, :, None, None]
                + (beta - mean * inv)[None, :, None, None])

    def conv(z, w, s, pad, fg):
        return lax.conv_general_dilated(
            z, w, (s, s), pad, dimension_numbers=('NCHW', 'OIHW', 'NCHW'),
            feature_group_count=fg)

    shortcut = x
    y = jax.nn.relu(bn(conv(x, raw['w1'], 1, 'VALID', g1), raw['bn1']))
    b, c, h, w = y.shape
    y = y.reshape(b, groups, c // groups, h, w).transpose(0, 2, 1, 3, 4)
    y = y.reshape(b, c, h, w)
    y = bn(conv(y, raw['wd'], stride, ((1, 1), (1, 1)), c), raw['bnd'])
    y = bn(conv(y, raw['w2'], 1, 'VALID', groups), raw['bn2'])
    if stride == 1:
        out = y + shortcut
    else:
        sc = lax.reduce_window(shortcut, 0.0, lax.add, (1, 1, 3, 3),
                               (1, 1, 2, 2),
                               ((0, 0), (0, 0), (1, 1), (1, 1))) / 9.0
        out = jnp.concatenate([y, sc], axis=1)
    return jax.nn.relu(out)


# ----------------------------- main ------------------------------------------

if __name__ == "__main__":
    key = jax.random.PRNGKey(0)
    kx, kparams = jax.random.split(key)

    groups, in_ch, mid_ch, out_ch, stride = 2, 8, 8, 8, 1
    N, H, W = 2, 16, 16

    x = jax.random.normal(kx, (N, in_ch, H, W), jnp.float32)
    raw = init_raw_params(kparams, groups, in_ch, mid_ch, out_ch, stride,
                          first_pw=False)
    kp = build_kernel_params(raw)

    fwd = jax.jit(functools.partial(shufflenet_unit_forward, stride=stride))
    out = jax.block_until_ready(fwd(x, kp))

    ref = reference_forward(x, raw)
    # bf16 activations/weights in the kernel vs f32 reference -> loose tols.
    np.testing.assert_allclose(np.asarray(out), np.asarray(ref),
                               rtol=5e-2, atol=5e-2)
    print("KERNEL_OK")
</pallas_src>

<mosaic_0001>
module attributes {stable_mosaic.version = 11 : i64} {
  func.func @_unit_s1_kernel(%arg0: i32, %arg1: memref<1x256x8xbf16, #tpu.memory_space<vmem>>, %arg2: memref<8x8xbf16, #tpu.memory_space<vmem>>, %arg3: memref<1x8xf32, #tpu.memory_space<vmem>>, %arg4: memref<9x8xf32, #tpu.memory_space<vmem>>, %arg5: memref<1x8xf32, #tpu.memory_space<vmem>>, %arg6: memref<8x8xbf16, #tpu.memory_space<vmem>>, %arg7: memref<1x8xf32, #tpu.memory_space<vmem>>, %arg8: memref<1x256x8xf32, #tpu.memory_space<vmem>>, %arg9: memref<18x18x8xf32, #tpu.memory_space<vmem>>) attributes {dimension_semantics = [#tpu.dimension_semantics<parallel>], iteration_bounds = array<i64: 2>, scalar_prefetch = 0 : i64, scratch_operands = 1 : i64, tpu.core_type = #tpu.core_type<tc>, window_params = [{transform_indices = @transform_0, window_bounds = array<i64: 1, 256, 8>}, {pipeline_mode = #tpu.pipeline_mode<synchronous>, transform_indices = @transform_1, window_bounds = array<i64: 8, 8>}, {pipeline_mode = #tpu.pipeline_mode<synchronous>, transform_indices = @transform_2, window_bounds = array<i64: 1, 8>}, {pipeline_mode = #tpu.pipeline_mode<synchronous>, transform_indices = @transform_3, window_bounds = array<i64: 9, 8>}, {pipeline_mode = #tpu.pipeline_mode<synchronous>, transform_indices = @transform_4, window_bounds = array<i64: 1, 8>}, {pipeline_mode = #tpu.pipeline_mode<synchronous>, transform_indices = @transform_5, window_bounds = array<i64: 8, 8>}, {pipeline_mode = #tpu.pipeline_mode<synchronous>, transform_indices = @transform_6, window_bounds = array<i64: 1, 8>}, {transform_indices = @transform_7, window_bounds = array<i64: 1, 256, 8>}]} {
    %c0 = arith.constant 0 : index
    %c0_0 = arith.constant 0 : index
    %c0_1 = arith.constant 0 : index
    %0 = vector.load %arg1[%c0, %c0_0, %c0_1] : memref<1x256x8xbf16, #tpu.memory_space<vmem>>, vector<1x256x8xbf16>
    %1 = vector.shape_cast %0 : vector<1x256x8xbf16> to vector<256x8xbf16>
    %c0_2 = arith.constant 0 : index
    %c0_3 = arith.constant 0 : index
    %2 = vector.load %arg2[%c0_2, %c0_3] : memref<8x8xbf16, #tpu.memory_space<vmem>>, vector<8x8xbf16>
    %cst = arith.constant dense<0.000000e+00> : vector<256x8xf32>
    %3 = tpu.matmul %1, %2, %cst {dimension_numbers = #tpu.dot_dimension_numbers<[1], [0], [0], [1], [0, 0, 1, 1], [], []>} : vector<256x8xbf16>, vector<8x8xbf16>, vector<256x8xf32> -> vector<256x8xf32>
    %c0_4 = arith.constant 0 : index
    %c0_5 = arith.constant 0 : index
    %4 = vector.load %arg3[%c0_4, %c0_5] : memref<1x8xf32, #tpu.memory_space<vmem>>, vector<1x8xf32>
    %5 = vector.broadcast %4 : vector<1x8xf32> to vector<256x8xf32>
    %6 = arith.addf %3, %5 : vector<256x8xf32>
    %cst_6 = arith.constant 0.000000e+00 : f32
    %7 = vector.broadcast %cst_6 : f32 to vector<256x8xf32>
    %8 = arith.maximumf %6, %7 : vector<256x8xf32>
    %cst_7 = arith.constant 0.000000e+00 : f32
    %9 = vector.broadcast %cst_7 : f32 to vector<18x18x8xf32>
    %c0_8 = arith.constant 0 : index
    %c0_9 = arith.constant 0 : index
    %c0_10 = arith.constant 0 : index
    %10 = vector.load %arg9[%c0_8, %c0_9, %c0_10] : memref<18x18x8xf32, #tpu.memory_space<vmem>>, vector<18x18x8xf32>
    tpu.vector_store %arg9[%c0_8, %c0_9, %c0_10], %9 {strides = array<i32>} : memref<18x18x8xf32, #tpu.memory_space<vmem>>, vector<18x18x8xf32>,
    %11 = vector.shape_cast %8 : vector<256x8xf32> to vector<16x16x8xf32>
    %c1 = arith.constant 1 : index
    %c1_11 = arith.constant 1 : index
    %c0_12 = arith.constant 0 : index
    %12 = vector.load %arg9[%c1, %c1_11, %c0_12] : memref<18x18x8xf32, #tpu.memory_space<vmem>>, vector<16x16x8xf32>
    tpu.vector_store %arg9[%c1, %c1_11, %c0_12], %11 {strides = array<i32>} : memref<18x18x8xf32, #tpu.memory_space<vmem>>, vector<16x16x8xf32>,
    %cst_13 = arith.constant 0.000000e+00 : f32
    %13 = vector.broadcast %cst_13 : f32 to vector<16x16x8xf32>
    %c0_14 = arith.constant 0 : index
    %c0_15 = arith.constant 0 : index
    %c0_16 = arith.constant 0 : index
    %14 = vector.load %arg9[%c0_14, %c0_15, %c0_16] : memref<18x18x8xf32, #tpu.memory_space<vmem>>, vector<16x16x8xf32>
    %c0_17 = arith.constant 0 : index
    %c0_18 = arith.constant 0 : index
    %15 = vector.load %arg4[%c0_17, %c0_18] : memref<9x8xf32, #tpu.memory_space<vmem>>, vector<1x8xf32>
    %16 = vector.shape_cast %15 : vector<1x8xf32> to vector<8xf32>
    %17 = vector.shape_cast %16 : vector<8xf32> to vector<1x1x8xf32>
    %18 = vector.broadcast %17 : vector<1x1x8xf32> to vector<16x16x8xf32>
    %19 = arith.mulf %14, %18 : vector<16x16x8xf32>
    %20 = arith.addf %13, %19 : vector<16x16x8xf32>
    %c0_19 = arith.constant 0 : index
    %c1_20 = arith.constant 1 : index
    %c0_21 = arith.constant 0 : index
    %21 = vector.load %arg9[%c0_19, %c1_20, %c0_21] : memref<18x18x8xf32, #tpu.memory_space<vmem>>, vector<16x16x8xf32>
    %c1_22 = arith.constant 1 : index
    %c0_23 = arith.constant 0 : index
    %22 = vector.load %arg4[%c1_22, %c0_23] : memref<9x8xf32, #tpu.memory_space<vmem>>, vector<1x8xf32>
    %23 = vector.shape_cast %22 : vector<1x8xf32> to vector<8xf32>
    %24 = vector.shape_cast %23 : vector<8xf32> to vector<1x1x8xf32>
    %25 = vector.broadcast %24 : vector<1x1x8xf32> to vector<16x16x8xf32>
    %26 = arith.mulf %21, %25 : vector<16x16x8xf32>
    %27 = arith.addf %20, %26 : vector<16x16x8xf32>
    %c0_24 = arith.constant 0 : index
    %c2 = arith.constant 2 : index
    %c0_25 = arith.constant 0 : index
    %28 = vector.load %arg9[%c0_24, %c2, %c0_25] : memref<18x18x8xf32, #tpu.memory_space<vmem>>, vector<16x16x8xf32>
    %c2_26 = arith.constant 2 : index
    %c0_27 = arith.constant 0 : index
    %29 = vector.load %arg4[%c2_26, %c0_27] : memref<9x8xf32, #tpu.memory_space<vmem>>, vector<1x8xf32>
    %30 = vector.shape_cast %29 : vector<1x8xf32> to vector<8xf32>
    %31 = vector.shape_cast %30 : vector<8xf32> to vector<1x1x8xf32>
    %32 = vector.broadcast %31 : vector<1x1x8xf32> to vector<16x16x8xf32>
    %33 = arith.mulf %28, %32 : vector<16x16x8xf32>
    %34 = arith.addf %27, %33 : vector<16x16x8xf32>
    %c1_28 = arith.constant 1 : index
    %c0_29 = arith.constant 0 : index
    %c0_30 = arith.constant 0 : index
    %35 = vector.load %arg9[%c1_28, %c0_29, %c0_30] : memref<18x18x8xf32, #tpu.memory_space<vmem>>, vector<16x16x8xf32>
    %c3 = arith.constant 3 : index
    %c0_31 = arith.constant 0 : index
    %36 = vector.load %arg4[%c3, %c0_31] : memref<9x8xf32, #tpu.memory_space<vmem>>, vector<1x8xf32>
    %37 = vector.shape_cast %36 : vector<1x8xf32> to vector<8xf32>
    %38 = vector.shape_cast %37 : vector<8xf32> to vector<1x1x8xf32>
    %39 = vector.broadcast %38 : vector<1x1x8xf32> to vector<16x16x8xf32>
    %40 = arith.mulf %35, %39 : vector<16x16x8xf32>
    %41 = arith.addf %34, %40 : vector<16x16x8xf32>
    %c1_32 = arith.constant 1 : index
    %c1_33 = arith.constant 1 : index
    %c0_34 = arith.constant 0 : index
    %42 = vector.load %arg9[%c1_32, %c1_33, %c0_34] : memref<18x18x8xf32, #tpu.memory_space<vmem>>, vector<16x16x8xf32>
    %c4 = arith.constant 4 : index
    %c0_35 = arith.constant 0 : index
    %43 = vector.load %arg4[%c4, %c0_35] : memref<9x8xf32, #tpu.memory_space<vmem>>, vector<1x8xf32>
    %44 = vector.shape_cast %43 : vector<1x8xf32> to vector<8xf32>
    %45 = vector.shape_cast %44 : vector<8xf32> to vector<1x1x8xf32>
    %46 = vector.broadcast %45 : vector<1x1x8xf32> to vector<16x16x8xf32>
    %47 = arith.mulf %42, %46 : vector<16x16x8xf32>
    %48 = arith.addf %41, %47 : vector<16x16x8xf32>
    %c1_36 = arith.constant 1 : index
    %c2_37 = arith.constant 2 : index
    %c0_38 = arith.constant 0 : index
    %49 = vector.load %arg9[%c1_36, %c2_37, %c0_38] : memref<18x18x8xf32, #tpu.memory_space<vmem>>, vector<16x16x8xf32>
    %c5 = arith.constant 5 : index
    %c0_39 = arith.constant 0 : index
    %50 = vector.load %arg4[%c5, %c0_39] : memref<9x8xf32, #tpu.memory_space<vmem>>, vector<1x8xf32>
    %51 = vector.shape_cast %50 : vector<1x8xf32> to vector<8xf32>
    %52 = vector.shape_cast %51 : vector<8xf32> to vector<1x1x8xf32>
    %53 = vector.broadcast %52 : vector<1x1x8xf32> to vector<16x16x8xf32>
    %54 = arith.mulf %49, %53 : vector<16x16x8xf32>
    %55 = arith.addf %48, %54 : vector<16x16x8xf32>
    %c2_40 = arith.constant 2 : index
    %c0_41 = arith.constant 0 : index
    %c0_42 = arith.constant 0 : index
    %56 = vector.load %arg9[%c2_40, %c0_41, %c0_42] : memref<18x18x8xf32, #tpu.memory_space<vmem>>, vector<16x16x8xf32>
    %c6 = arith.constant 6 : index
    %c0_43 = arith.constant 0 : index
    %57 = vector.load %arg4[%c6, %c0_43] : memref<9x8xf32, #tpu.memory_space<vmem>>, vector<1x8xf32>
    %58 = vector.shape_cast %57 : vector<1x8xf32> to vector<8xf32>
    %59 = vector.shape_cast %58 : vector<8xf32> to vector<1x1x8xf32>
    %60 = vector.broadcast %59 : vector<1x1x8xf32> to vector<16x16x8xf32>
    %61 = arith.mulf %56, %60 : vector<16x16x8xf32>
    %62 = arith.addf %55, %61 : vector<16x16x8xf32>
    %c2_44 = arith.constant 2 : index
    %c1_45 = arith.constant 1 : index
    %c0_46 = arith.constant 0 : index
    %63 = vector.load %arg9[%c2_44, %c1_45, %c0_46] : memref<18x18x8xf32, #tpu.memory_space<vmem>>, vector<16x16x8xf32>
    %c7 = arith.constant 7 : index
    %c0_47 = arith.constant 0 : index
    %64 = vector.load %arg4[%c7, %c0_47] : memref<9x8xf32, #tpu.memory_space<vmem>>, vector<1x8xf32>
    %65 = vector.shape_cast %64 : vector<1x8xf32> to vector<8xf32>
    %66 = vector.shape_cast %65 : vector<8xf32> to vector<1x1x8xf32>
    %67 = vector.broadcast %66 : vector<1x1x8xf32> to vector<16x16x8xf32>
    %68 = arith.mulf %63, %67 : vector<16x16x8xf32>
    %69 = arith.addf %62, %68 : vector<16x16x8xf32>
    %c2_48 = arith.constant 2 : index
    %c2_49 = arith.constant 2 : index
    %c0_50 = arith.constant 0 : index
    %70 = vector.load %arg9[%c2_48, %c2_49, %c0_50] : memref<18x18x8xf32, #tpu.memory_space<vmem>>, vector<16x16x8xf32>
    %c8 = arith.constant 8 : index
    %c0_51 = arith.constant 0 : index
    %71 = vector.load %arg4[%c8, %c0_51] : memref<9x8xf32, #tpu.memory_space<vmem>>, vector<1x8xf32>
    %72 = vector.shape_cast %71 : vector<1x8xf32> to vector<8xf32>
    %73 = vector.shape_cast %72 : vector<8xf32> to vector<1x1x8xf32>
    %74 = vector.broadcast %73 : vector<1x1x8xf32> to vector<16x16x8xf32>
    %75 = arith.mulf %70, %74 : vector<16x16x8xf32>
    %76 = arith.addf %69, %75 : vector<16x16x8xf32>
    %c0_52 = arith.constant 0 : index
    %c0_53 = arith.constant 0 : index
    %77 = vector.load %arg5[%c0_52, %c0_53] : memref<1x8xf32, #tpu.memory_space<vmem>>, vector<1x8xf32>
    %78 = vector.shape_cast %77 : vector<1x8xf32> to vector<8xf32>
    %79 = vector.shape_cast %78 : vector<8xf32> to vector<1x1x8xf32>
    %80 = vector.broadcast %79 : vector<1x1x8xf32> to vector<16x16x8xf32>
    %81 = arith.addf %76, %80 : vector<16x16x8xf32>
    %82 = vector.shape_cast %81 : vector<16x16x8xf32> to vector<256x8xf32>
    %83 = arith.truncf %82 : vector<256x8xf32> to vector<256x8xbf16>
    %c0_54 = arith.constant 0 : index
    %c0_55 = arith.constant 0 : index
    %84 = vector.load %arg6[%c0_54, %c0_55] : memref<8x8xbf16, #tpu.memory_space<vmem>>, vector<8x8xbf16>
    %cst_56 = arith.constant dense<0.000000e+00> : vector<256x8xf32>
    %85 = tpu.matmul %83, %84, %cst_56 {dimension_numbers = #tpu.dot_dimension_numbers<[1], [0], [0], [1], [0, 0, 1, 1], [], []>} : vector<256x8xbf16>, vector<8x8xbf16>, vector<256x8xf32> -> vector<256x8xf32>
    %c0_57 = arith.constant 0 : index
    %c0_58 = arith.constant 0 : index
    %86 = vector.load %arg7[%c0_57, %c0_58] : memref<1x8xf32, #tpu.memory_space<vmem>>, vector<1x8xf32>
    %87 = vector.broadcast %86 : vector<1x8xf32> to vector<256x8xf32>
    %88 = arith.addf %85, %87 : vector<256x8xf32>
    %89 = arith.extf %1 : vector<256x8xbf16> to vector<256x8xf32>
    %90 = arith.addf %88, %89 : vector<256x8xf32>
    %cst_59 = arith.constant 0.000000e+00 : f32
    %91 = vector.broadcast %cst_59 : f32 to vector<256x8xf32>
    %92 = arith.maximumf %90, %91 : vector<256x8xf32>
    %c0_60 = arith.constant 0 : index
    %c0_61 = arith.constant 0 : index
    %c0_62 = arith.constant 0 : index
    %93 = vector.load %arg8[%c0_60, %c0_61, %c0_62] : memref<1x256x8xf32, #tpu.memory_space<vmem>>, vector<1x256x8xf32>
    %94 = vector.shape_cast %93 : vector<1x256x8xf32> to vector<256x8xf32>
    %95 = vector.shape_cast %92 : vector<256x8xf32> to vector<1x256x8xf32>
    tpu.vector_store %arg8[%c0_60, %c0_61, %c0_62], %95 {strides = array<i32>} : memref<1x256x8xf32, #tpu.memory_space<vmem>>, vector<1x256x8xf32>,
    return
  }
  func.func @transform_0(%arg0: i32) -> (i32, i32, i32) {
    %c0_i32 = arith.constant 0 : i32
    %c0_i32_0 = arith.constant 0 : i32
    %c0_i32_1 = arith.constant 0 : i32
    return %arg0, %c0_i32, %c0_i32_0 : i32, i32, i32
  }
  func.func @transform_1(%arg0: i32) -> (i32, i32) {
    %c0_i32 = arith.constant 0 : i32
    %c0_i32_0 = arith.constant 0 : i32
    %c0_i32_1 = arith.constant 0 : i32
    return %c0_i32, %c0_i32_0 : i32, i32
  }
  func.func @transform_2(%arg0: i32) -> (i32, i32) {
    %c0_i32 = arith.constant 0 : i32
    %c0_i32_0 = arith.constant 0 : i32
    %c0_i32_1 = arith.constant 0 : i32
    return %c0_i32, %c0_i32_0 : i32, i32
  }
  func.func @transform_3(%arg0: i32) -> (i32, i32) {
    %c0_i32 = arith.constant 0 : i32
    %c0_i32_0 = arith.constant 0 : i32
    %c0_i32_1 = arith.constant 0 : i32
    return %c0_i32, %c0_i32_0 : i32, i32
  }
  func.func @transform_4(%arg0: i32) -> (i32, i32) {
    %c0_i32 = arith.constant 0 : i32
    %c0_i32_0 = arith.constant 0 : i32
    %c0_i32_1 = arith.constant 0 : i32
    return %c0_i32, %c0_i32_0 : i32, i32
  }
  func.func @transform_5(%arg0: i32) -> (i32, i32) {
    %c0_i32 = arith.constant 0 : i32
    %c0_i32_0 = arith.constant 0 : i32
    %c0_i32_1 = arith.constant 0 : i32
    return %c0_i32, %c0_i32_0 : i32, i32
  }
  func.func @transform_6(%arg0: i32) -> (i32, i32) {
    %c0_i32 = arith.constant 0 : i32
    %c0_i32_0 = arith.constant 0 : i32
    %c0_i32_1 = arith.constant 0 : i32
    return %c0_i32, %c0_i32_0 : i32, i32
  }
  func.func @transform_7(%arg0: i32) -> (i32, i32, i32) {
    %c0_i32 = arith.constant 0 : i32
    %c0_i32_0 = arith.constant 0 : i32
    %c0_i32_1 = arith.constant 0 : i32
    return %arg0, %c0_i32, %c0_i32_0 : i32, i32, i32
  }
}

</mosaic_0001>

<llo_original>
// kernel: shufflenet_unit_forward.1
$region0: #{shufflenet_unit_forward.1}
  #allocation0 [shape = 'u32[]', space=smem, size = 0x4, offset = 0x4, fixed_abs, tag = 'smem constant byte address 0x4 - core index']
  #allocation1 [shape = 'u32[144,128]{1,0:T(1,128)}', space=vmem, size = 0x12000, scoped, tag = 'internal scratch']
  #allocation2 [shape = 'f32[18,18,8]{2,1,0:T(8,128)}', space=vmem, size = 0x36000, scoped, tag = 'scratch operand']
  %s0 = inlined_call_operand.vmem [shape: bf16[2,256,8], index: 0, kind: input, shape index: {}]
  %s1 = inlined_call_operand.vmem [shape: bf16[8,8], index: 1, kind: input, shape index: {}]
  %s2 = inlined_call_operand.vmem [shape: f32[1,8], index: 2, kind: input, shape index: {}]
  %s3 = inlined_call_operand.vmem [shape: f32[9,8], index: 3, kind: input, shape index: {}]
  %s4 = inlined_call_operand.vmem [shape: f32[1,8], index: 4, kind: input, shape index: {}]
  %s5 = inlined_call_operand.vmem [shape: bf16[8,8], index: 5, kind: input, shape index: {}]
  %s6 = inlined_call_operand.vmem [shape: f32[1,8], index: 6, kind: input, shape index: {}]
  %s7 = inlined_call_operand.vmem [shape: f32[2,256,8], index: 7, kind: output, shape index: {}]
  %s8 = sld [smem:[#allocation0]]
  $region61: #{shufflenet_unit_forward.1} parent=0
    _
  %s10 = ssub.s32 1, %s8
  %s11 = scalar_select 0, %s10, %s8
  loop: start=0, step=1, limit=4
  $region2: #{shufflenet_unit_forward.1} parent=0 // loop_pre_header
    _
  $region3: #{shufflenet_unit_forward.1} parent=0 // loop_header
    %s13 = sphi 0, %s17
    %p14 = scmp.ge.s32.totalorder %s13, 4
    %s23 = sphi 0, %s25
    %s26 = sphi 0, %s23
    %s27 = sphi 0, %s26
    %s43 = sphi 0, %s27
    %s47 = sphi 0, %s47
    %s49 = sphi 0, %s47
    %s50 = sphi 0, %s49
    %s64 = sphi 0, %s50
    %s68 = sphi 0, %s68
    %s70 = sphi 0, %s68
    %s71 = sphi 0, %s70
    %s85 = sphi 0, %s71
    %s89 = sphi 0, %s89
    %s91 = sphi 0, %s89
    %s92 = sphi 0, %s91
    %s106 = sphi 0, %s92
    %s110 = sphi 0, %s110
    %s112 = sphi 0, %s110
    %s113 = sphi 0, %s112
    %s127 = sphi 0, %s113
    %s131 = sphi 0, %s131
    %s133 = sphi 0, %s131
    %s134 = sphi 0, %s133
    %s148 = sphi 0, %s134
    %s152 = sphi 0, %s152
    %s154 = sphi 0, %s152
    %s155 = sphi 0, %s154
    %s169 = sphi 0, %s155
    %s175 = sphi 0, %s177
    %s178 = sphi 0, %s175
    %s179 = sphi 0, %s178
    %s195 = sphi 0, %s179
  $region4: #{shufflenet_unit_forward.1} parent=0 // loop_header_branch
    %16 = sbr.rel (%p14) target = $region8
  $region5: #{shufflenet_unit_forward.1} parent=0 // loop_body
    %s18 = ssub.s32 %s13, 1
    %s19 = ssub.s32 %s13, 2
    %s20 = sadd.s32 %s13, 1
    %s21 = ssub.s32 %s13, %s20
    %p22 = scmp.eq.s32.totalorder %s21, 0
    %s24 = sadd.s32 %s23, 1
    %s25 = scalar_select %p22, %s23, %s24
    %p28 = pneg %p22
    %p29 = scmp.eq.s32.totalorder %s13, 1
    %p30 = por %p28, %p29
    %p31 = scmp.ne.s32.totalorder %s23, %s26
    %p32 = scmp.eq.s32.totalorder %s13, 0
    %p33 = por %p31, %p32
    %p34 = scmp.ne.s32.totalorder %s23, %s26
    %p35 = scmp.eq.s32.totalorder %s18, 1
    %p36 = por %p34, %p35
    %p37 = scmp.ne.s32.totalorder %s26, %s27
    %p38 = scmp.eq.s32.totalorder %s18, 0
    %p39 = por %p37, %p38
    %p40 = scmp.ne.s32.totalorder %s26, %s27
    %p41 = scmp.eq.s32.totalorder %s19, 1
    %p42 = por %p40, %p41
    %p44 = scmp.ne.s32.totalorder %s27, %s43
    %p45 = scmp.eq.s32.totalorder %s19, 0
    %p46 = por %p44, %p45
    %s48 = sadd.s32 %s47, 1
    %p51 = scmp.eq.s32.totalorder %s13, 1
    %p52 = scmp.ne.s32.totalorder %s47, %s49
    %p53 = scmp.eq.s32.totalorder %s13, 0
    %p54 = por %p52, %p53
    %p55 = scmp.ne.s32.totalorder %s47, %s49
    %p56 = scmp.eq.s32.totalorder %s18, 1
    %p57 = por %p55, %p56
    %p58 = scmp.ne.s32.totalorder %s49, %s50
    %p59 = scmp.eq.s32.totalorder %s18, 0
    %p60 = por %p58, %p59
    %p61 = scmp.ne.s32.totalorder %s49, %s50
    %p62 = scmp.eq.s32.totalorder %s19, 1
    %p63 = por %p61, %p62
    %p65 = scmp.ne.s32.totalorder %s50, %s64
    %p66 = scmp.eq.s32.totalorder %s19, 0
    %p67 = por %p65, %p66
    %s69 = sadd.s32 %s68, 1
    %p72 = scmp.eq.s32.totalorder %s13, 1
    %p73 = scmp.ne.s32.totalorder %s68, %s70
    %p74 = scmp.eq.s32.totalorder %s13, 0
    %p75 = por %p73, %p74
    %p76 = scmp.ne.s32.totalorder %s68, %s70
    %p77 = scmp.eq.s32.totalorder %s18, 1
    %p78 = por %p76, %p77
    %p79 = scmp.ne.s32.totalorder %s70, %s71
    %p80 = scmp.eq.s32.totalorder %s18, 0
    %p81 = por %p79, %p80
    %p82 = scmp.ne.s32.totalorder %s70, %s71
    %p83 = scmp.eq.s32.totalorder %s19, 1
    %p84 = por %p82, %p83
    %p86 = scmp.ne.s32.totalorder %s71, %s85
    %p87 = scmp.eq.s32.totalorder %s19, 0
    %p88 = por %p86, %p87
    %s90 = sadd.s32 %s89, 1
    %p93 = scmp.eq.s32.totalorder %s13, 1
    %p94 = scmp.ne.s32.totalorder %s89, %s91
    %p95 = scmp.eq.s32.totalorder %s13, 0
    %p96 = por %p94, %p95
    %p97 = scmp.ne.s32.totalorder %s89, %s91
    %p98 = scmp.eq.s32.totalorder %s18, 1
    %p99 = por %p97, %p98
    %p100 = scmp.ne.s32.totalorder %s91, %s92
    %p101 = scmp.eq.s32.totalorder %s18, 0
    %p102 = por %p100, %p101
    %p103 = scmp.ne.s32.totalorder %s91, %s92
    %p104 = scmp.eq.s32.totalorder %s19, 1
    %p105 = por %p103, %p104
    %p107 = scmp.ne.s32.totalorder %s92, %s106
    %p108 = scmp.eq.s32.totalorder %s19, 0
    %p109 = por %p107, %p108
    %s111 = sadd.s32 %s110, 1
    %p114 = scmp.eq.s32.totalorder %s13, 1
    %p115 = scmp.ne.s32.totalorder %s110, %s112
    %p116 = scmp.eq.s32.totalorder %s13, 0
    %p117 = por %p115, %p116
    %p118 = scmp.ne.s32.totalorder %s110, %s112
    %p119 = scmp.eq.s32.totalorder %s18, 1
    %p120 = por %p118, %p119
    %p121 = scmp.ne.s32.totalorder %s112, %s113
    %p122 = scmp.eq.s32.totalorder %s18, 0
    %p123 = por %p121, %p122
    %p124 = scmp.ne.s32.totalorder %s112, %s113
    %p125 = scmp.eq.s32.totalorder %s19, 1
    %p126 = por %p124, %p125
    %p128 = scmp.ne.s32.totalorder %s113, %s127
    %p129 = scmp.eq.s32.totalorder %s19, 0
    %p130 = por %p128, %p129
    %s132 = sadd.s32 %s131, 1
    %p135 = scmp.eq.s32.totalorder %s13, 1
    %p136 = scmp.ne.s32.totalorder %s131, %s133
    %p137 = scmp.eq.s32.totalorder %s13, 0
    %p138 = por %p136, %p137
    %p139 = scmp.ne.s32.totalorder %s131, %s133
    %p140 = scmp.eq.s32.totalorder %s18, 1
    %p141 = por %p139, %p140
    %p142 = scmp.ne.s32.totalorder %s133, %s134
    %p143 = scmp.eq.s32.totalorder %s18, 0
    %p144 = por %p142, %p143
    %p145 = scmp.ne.s32.totalorder %s133, %s134
    %p146 = scmp.eq.s32.totalorder %s19, 1
    %p147 = por %p145, %p146
    %p149 = scmp.ne.s32.totalorder %s134, %s148
    %p150 = scmp.eq.s32.totalorder %s19, 0
    %p151 = por %p149, %p150
    %s153 = sadd.s32 %s152, 1
    %p156 = scmp.eq.s32.totalorder %s13, 1
    %p157 = scmp.ne.s32.totalorder %s152, %s154
    %p158 = scmp.eq.s32.totalorder %s13, 0
    %p159 = por %p157, %p158
    %p160 = scmp.ne.s32.totalorder %s152, %s154
    %p161 = scmp.eq.s32.totalorder %s18, 1
    %p162 = por %p160, %p161
    %p163 = scmp.ne.s32.totalorder %s154, %s155
    %p164 = scmp.eq.s32.totalorder %s18, 0
    %p165 = por %p163, %p164
    %p166 = scmp.ne.s32.totalorder %s154, %s155
    %p167 = scmp.eq.s32.totalorder %s19, 1
    %p168 = por %p166, %p167
    %p170 = scmp.ne.s32.totalorder %s155, %s169
    %p171 = scmp.eq.s32.totalorder %s19, 0
    %p172 = por %p170, %p171
    %s173 = ssub.s32 %s13, %s20
    %p174 = scmp.eq.s32.totalorder %s173, 0
    %s176 = sadd.s32 %s175, 1
    %s177 = scalar_select %p174, %s175, %s176
    %p180 = pneg %p174
    %p181 = scmp.eq.s32.totalorder %s13, 1
    %p182 = por %p180, %p181
    %p183 = scmp.ne.s32.totalorder %s175, %s178
    %p184 = scmp.eq.s32.totalorder %s13, 0
    %p185 = por %p183, %p184
    %p186 = scmp.ne.s32.totalorder %s175, %s178
    %p187 = scmp.eq.s32.totalorder %s18, 1
    %p188 = por %p186, %p187
    %p189 = scmp.ne.s32.totalorder %s178, %s179
    %p190 = scmp.eq.s32.totalorder %s18, 0
    %p191 = por %p189, %p190
    %p192 = scmp.ne.s32.totalorder %s178, %s179
    %p193 = scmp.eq.s32.totalorder %s19, 1
    %p194 = por %p192, %p193
    %p196 = scmp.ne.s32.totalorder %s179, %s195
    %p197 = scmp.eq.s32.totalorder %s19, 0
    %p198 = por %p196, %p197
    %p199 = scmp.le.s32.totalorder 1, %s13
    %p200 = scmp.lt.s32.totalorder %s13, 3
    %p201 = pnand %p199, %p200
    %p202 = pneg %p201
    // Predicated region
    $region9: #{shufflenet_unit_forward.1} parent=5 // pred_check
      _
    $region10: #{shufflenet_unit_forward.1} parent=5 // pred_check_branch
      %204 = sbr.rel (%p201) target = $region12
    $region11: #{shufflenet_unit_forward.1} parent=5 // pred_region
      %s205 = ssub.s32 %s13, 1
      // Predicated region
      $region13: #{shufflenet_unit_forward.1} parent=11 // pred_check
        %p206 = pneg %p60
      $region14: #{shufflenet_unit_forward.1} parent=11 // pred_check_branch
        %208 = sbr.rel (%p206) target = $region16
      $region15: #{shufflenet_unit_forward.1} parent=11 // pred_region
        _
      $region16: #{shufflenet_unit_forward.1} parent=11 // pred_fallthru
        _
      // Predicated region
      $region17: #{shufflenet_unit_forward.1} parent=11 // pred_check
        %p209 = pneg %p81
      $region18: #{shufflenet_unit_forward.1} parent=11 // pred_check_branch
        %211 = sbr.rel (%p209) target = $region20
      $region19: #{shufflenet_unit_forward.1} parent=11 // pred_region
        _
      $region20: #{shufflenet_unit_forward.1} parent=11 // pred_fallthru
        _
      // Predicated region
      $region21: #{shufflenet_unit_forward.1} parent=11 // pred_check
        %p212 = pneg %p102
      $region22: #{shufflenet_unit_forward.1} parent=11 // pred_check_branch
        %214 = sbr.rel (%p212) target = $region24
      $region23: #{shufflenet_unit_forward.1} parent=11 // pred_region
        _
      $region24: #{shufflenet_unit_forward.1} parent=11 // pred_fallthru
        _
      // Predicated region
      $region25: #{shufflenet_unit_forward.1} parent=11 // pred_check
        %p215 = pneg %p123
      $region26: #{shufflenet_unit_forward.1} parent=11 // pred_check_branch
        %217 = sbr.rel (%p215) target = $region28
      $region27: #{shufflenet_unit_forward.1} parent=11 // pred_region
        _
      $region28: #{shufflenet_unit_forward.1} parent=11 // pred_fallthru
        _
      // Predicated region
      $region29: #{shufflenet_unit_forward.1} parent=11 // pred_check
        %p218 = pneg %p144
      $region30: #{shufflenet_unit_forward.1} parent=11 // pred_check_branch
        %220 = sbr.rel (%p218) target = $region32
      $region31: #{shufflenet_unit_forward.1} parent=11 // pred_region
        _
      $region32: #{shufflenet_unit_forward.1} parent=11 // pred_fallthru
        _
      // Predicated region
      $region33: #{shufflenet_unit_forward.1} parent=11 // pred_check
        %p221 = pneg %p165
      $region34: #{shufflenet_unit_forward.1} parent=11 // pred_check_branch
        %223 = sbr.rel (%p221) target = $region36
      $region35: #{shufflenet_unit_forward.1} parent=11 // pred_region
        _
      $region36: #{shufflenet_unit_forward.1} parent=11 // pred_fallthru
        _
    $region12: #{shufflenet_unit_forward.1} parent=5 // pred_fallthru
      _
    %p224 = scmp.lt.s32.totalorder %s13, 2
    // Predicated region
    $region37: #{shufflenet_unit_forward.1} parent=5 // pred_check
      %p225 = pneg %p224
    $region38: #{shufflenet_unit_forward.1} parent=5 // pred_check_branch
      %227 = sbr.rel (%p225) target = $region40
    $region39: #{shufflenet_unit_forward.1} parent=5 // pred_region
      // Predicated region
      $region41: #{shufflenet_unit_forward.1} parent=39 // pred_check
        %p228 = pneg %p33
      $region42: #{shufflenet_unit_forward.1} parent=39 // pred_check_branch
        %230 = sbr.rel (%p228) target = $region44
      $region43: #{shufflenet_unit_forward.1} parent=39 // pred_region
        %p231 = scmp.lt.s32.totalorder %s13, 1
        %s232 = scalar_select %p231, %s13, 1
        %s233 = smul.addr %s232, 32
        %s234 = smul.addr %s233, 4
        %s235 = scalar_lea.vmem %s0, %s234
      $region44: #{shufflenet_unit_forward.1} parent=39 // pred_fallthru
        _
    $region40: #{shufflenet_unit_forward.1} parent=5 // pred_fallthru
      _
    %p236 = scmp.le.s32.totalorder 1, %s13
    %p237 = scmp.lt.s32.totalorder %s13, 3
    %p238 = pnand %p236, %p237
    %p239 = pneg %p238
    // Predicated region
    $region45: #{shufflenet_unit_forward.1} parent=5 // pred_check
      _
    $region46: #{shufflenet_unit_forward.1} parent=5 // pred_check_branch
      %241 = sbr.rel (%p238) target = $region48
    $region47: #{shufflenet_unit_forward.1} parent=5 // pred_region
      %s242 = ssub.s32 %s13, 1
      %p243 = scmp.lt.s32.totalorder %s18, 1
      %s244 = scalar_select %p243, %s18, 1
      %s245 = smul.addr %s244, 32
      %s246 = smul.addr %s245, 4
      %s247 = scalar_lea.vmem %s0, %s246
      %p248 = pneg %p39
      %p249 = pneg %p36
      %p250 = pneg %p60
      %p251 = pneg %p57
      %p252 = pneg %p81
      %p253 = pneg %p78
      %p254 = pneg %p102
      %p255 = pneg %p99
      %p256 = pneg %p123
      %p257 = pneg %p120
      %p258 = pneg %p144
      %p259 = pneg %p141
      %p260 = pneg %p165
      %p261 = pneg %p162
      %p262 = pneg %p191
      %p263 = pneg %p188
      %p264 = scmp.lt.s32.totalorder %s18, 1
      %s265 = scalar_select %p264, %s18, 1
      %s266 = smul.addr %s265, 32
      %s267 = smul.addr %s266, 8
      %s268 = scalar_lea.vmem %s7, %s267
      %p269 = scmp.lt.s32.totalorder %s18, 1
      %s270 = scalar_select %p269, %s18, 1
      %s271 = smul.addr %s270, 32
      %s272 = smul.addr %s271, 4
      %s273 = scalar_lea.vmem %s0, %s272
      %p274 = scmp.lt.s32.totalorder %s18, 1
      %s275 = scalar_select %p274, %s18, 1
      %s276 = smul.addr %s275, 32
      %s277 = smul.addr %s276, 8
      %s278 = scalar_lea.vmem %s7, %s277
      %v280 = vld [vmem:[%s273] sm:$0xf]
      %v281 = vld [vmem:[%s273 + $0x4] sm:$0xf]
      %v282 = vld [vmem:[%s273 + $0x8] sm:$0xf]
      %v283 = vld [vmem:[%s273 + $0xc] sm:$0xf]
      %v284 = vld [vmem:[%s273 + $0x10] sm:$0xf]
      %v285 = vld [vmem:[%s273 + $0x14] sm:$0xf]
      %v286 = vld [vmem:[%s273 + $0x18] sm:$0xf]
      %v287 = vld [vmem:[%s273 + $0x1c] sm:$0xf]
      %v288 = vld [vmem:[%s273 + $0x20] sm:$0xf]
      %v289 = vld [vmem:[%s273 + $0x24] sm:$0xf]
      %v290 = vld [vmem:[%s273 + $0x28] sm:$0xf]
      %v291 = vld [vmem:[%s273 + $0x2c] sm:$0xf]
      %v292 = vld [vmem:[%s273 + $0x30] sm:$0xf]
      %v293 = vld [vmem:[%s273 + $0x34] sm:$0xf]
      %v294 = vld [vmem:[%s273 + $0x38] sm:$0xf]
      %v295 = vld [vmem:[%s273 + $0x3c] sm:$0xf]
      %v296 = vld [vmem:[%s273 + $0x40] sm:$0xf]
      %v297 = vld [vmem:[%s273 + $0x44] sm:$0xf]
      %v298 = vld [vmem:[%s273 + $0x48] sm:$0xf]
      %v299 = vld [vmem:[%s273 + $0x4c] sm:$0xf]
      %v300 = vld [vmem:[%s273 + $0x50] sm:$0xf]
      %v301 = vld [vmem:[%s273 + $0x54] sm:$0xf]
      %v302 = vld [vmem:[%s273 + $0x58] sm:$0xf]
      %v303 = vld [vmem:[%s273 + $0x5c] sm:$0xf]
      %v304 = vld [vmem:[%s273 + $0x60] sm:$0xf]
      %v305 = vld [vmem:[%s273 + $0x64] sm:$0xf]
      %v306 = vld [vmem:[%s273 + $0x68] sm:$0xf]
      %v307 = vld [vmem:[%s273 + $0x6c] sm:$0xf]
      %v308 = vld [vmem:[%s273 + $0x70] sm:$0xf]
      %v309 = vld [vmem:[%s273 + $0x74] sm:$0xf]
      %v310 = vld [vmem:[%s273 + $0x78] sm:$0xf]
      %v311 = vld [vmem:[%s273 + $0x7c] sm:$0xf]
      %v312 = vld [vmem:[%s1] sm:$0xf]
      %v313 = vld [vmem:[%s2] sm:$0x1]
      %v315 = vlaneseq
      %v316 = vshrl.u32 %v315, 7
      %v317 = vsub.s32 0, %v316
      %v318 = vrot.slane %v313, %v317
      %v352 = vunpack.c.l.b16 %v280
      %v353 = vunpack.c.l.b16 %v281
      %v354 = vunpack.c.l.b16 %v282
      %v355 = vunpack.c.l.b16 %v283
      %v356 = vunpack.c.l.b16 %v284
      %v357 = vunpack.c.l.b16 %v285
      %v358 = vunpack.c.l.b16 %v286
      %v359 = vunpack.c.l.b16 %v287
      %v360 = vunpack.c.l.b16 %v288
      %v361 = vunpack.c.l.b16 %v289
      %v362 = vunpack.c.l.b16 %v290
      %v363 = vunpack.c.l.b16 %v291
      %v364 = vunpack.c.l.b16 %v292
      %v365 = vunpack.c.l.b16 %v293
      %v366 = vunpack.c.l.b16 %v294
      %v367 = vunpack.c.l.b16 %v295
      %v368 = vunpack.c.l.b16 %v296
      %v369 = vunpack.c.l.b16 %v297
      %v370 = vunpack.c.l.b16 %v298
      %v371 = vunpack.c.l.b16 %v299
      %v372 = vunpack.c.l.b16 %v300
      %v373 = vunpack.c.l.b16 %v301
      %v374 = vunpack.c.l.b16 %v302
      %v375 = vunpack.c.l.b16 %v303
      %v376 = vunpack.c.l.b16 %v304
      %v377 = vunpack.c.l.b16 %v305
      %v378 = vunpack.c.l.b16 %v306
      %v379 = vunpack.c.l.b16 %v307
      %v380 = vunpack.c.l.b16 %v308
      %v381 = vunpack.c.l.b16 %v309
      %v382 = vunpack.c.l.b16 %v310
      %v383 = vunpack.c.l.b16 %v311
      %v384 = vpack.c.b16 %v353, %v352
      %v385 = vpack.c.b16 %v355, %v354
      %v386 = vpack.c.b16 %v357, %v356
      %v387 = vpack.c.b16 %v359, %v358
      %v388 = vpack.c.b16 %v361, %v360
      %v389 = vpack.c.b16 %v363, %v362
      %v390 = vpack.c.b16 %v365, %v364
      %v391 = vpack.c.b16 %v367, %v366
      %v392 = vpack.c.b16 %v369, %v368
      %v393 = vpack.c.b16 %v371, %v370
      %v394 = vpack.c.b16 %v373, %v372
      %v395 = vpack.c.b16 %v375, %v374
      %v396 = vpack.c.b16 %v377, %v376
      %v397 = vpack.c.b16 %v379, %v378
      %v398 = vpack.c.b16 %v381, %v380
      %v399 = vpack.c.b16 %v383, %v382
      %vm400 = vcmask 64512
      %v402 = vsel %vm400, %v384, 0
      %v405 = vsel %vm400, %v385, 0
      %v408 = vsel %vm400, %v386, 0
      %v411 = vsel %vm400, %v387, 0
      %v414 = vsel %vm400, %v388, 0
      %v417 = vsel %vm400, %v389, 0
      %v420 = vsel %vm400, %v390, 0
      %v423 = vsel %vm400, %v391, 0
      %v426 = vsel %vm400, %v392, 0
      %v429 = vsel %vm400, %v393, 0
      %v432 = vsel %vm400, %v394, 0
      %v435 = vsel %vm400, %v395, 0
      %v438 = vsel %vm400, %v396, 0
      %v441 = vsel %vm400, %v397, 0
      %v444 = vsel %vm400, %v398, 0
      %v447 = vsel %vm400, %v399, 0
      %vm449 = vcmask 1043456
      %v451 = vsel %vm449, %v312, 0
      %453 = vmatprep.subr.bf16.mxu0 0
      %454 = vmatpush1.bf16.msra.mxu0 %v451
      %455 = vmatprep.subr.bf16.mxu0 0
      %456 = vmatpush1.bf16.msra.mxu0 0
      %457 = vmatprep.subr.bf16.mxu0 0
      %458 = vmatpush1.bf16.msra.mxu0 0
      %459 = vmatprep.subr.bf16.mxu0 0
      %460 = vmatpush1.bf16.msra.mxu0 0
      %461 = vmatprep.subr.bf16.mxu0 0
      %462 = vmatpush1.bf16.msra.mxu0 0
      %463 = vmatprep.subr.bf16.mxu0 0
      %464 = vmatpush1.bf16.msra.mxu0 0
      %465 = vmatprep.subr.bf16.mxu0 0
      %466 = vmatpush1.bf16.msra.mxu0 0
      %467 = vmatprep.subr.bf16.mxu0 0
      %468 = vmatpush1.bf16.msra.mxu0 0
      %469 = vmatprep.subr.bf16.mxu0 0
      %470 = vmatpush1.bf16.msra.mxu0 0
      %471 = vmatprep.subr.bf16.mxu0 0
      %472 = vmatpush1.bf16.msra.mxu0 0
      %473 = vmatprep.subr.bf16.mxu0 0
      %474 = vmatpush1.bf16.msra.mxu0 0
      %475 = vmatprep.subr.bf16.mxu0 0
      %476 = vmatpush1.bf16.msra.mxu0 0
      %477 = vmatprep.subr.bf16.mxu0 0
      %478 = vmatpush1.bf16.msra.mxu0 0
      %479 = vmatprep.subr.bf16.mxu0 0
      %480 = vmatpush1.bf16.msra.mxu0 0
      %481 = vmatprep.subr.bf16.mxu0 0
      %482 = vmatpush1.bf16.msra.mxu0 0
      %483 = vmatprep.subr.bf16.mxu0 0
      %484 = vmatpush1.bf16.msra.mxu0 0
      %485 = vmatprep.mubr.bf16.mxu0 0
      %486 = vmatmul.mubr.bf16.gmra.mrb[0].mxu0 %v402
      %v487 = vpop.f32.mrb[0].mxu0
      %v488 = vadd.f32 %v318, %v487
      %v489 = vpop.f32.mrb[0].mxu0
      %v490 = vpop.f32.mrb[0].mxu0
      %v491 = vadd.f32 %v318, %v490
      %v492 = vpop.f32.mrb[0].mxu0
      %493 = vmatprep.mubr.bf16.mxu0 0
      %494 = vmatmul.mubr.bf16.gmra.mrb[0].mxu0 %v405
      %v495 = vpop.f32.mrb[0].mxu0
      %v496 = vadd.f32 %v318, %v495
      %v497 = vpop.f32.mrb[0].mxu0
      %v498 = vpop.f32.mrb[0].mxu0
      %v499 = vadd.f32 %v318, %v498
      %v500 = vpop.f32.mrb[0].mxu0
      %501 = vmatprep.mubr.bf16.mxu0 0
      %502 = vmatmul.mubr.bf16.gmra.mrb[0].mxu0 %v408
      %v503 = vpop.f32.mrb[0].mxu0
      %v504 = vadd.f32 %v318, %v503
      %v505 = vpop.f32.mrb[0].mxu0
      %v506 = vpop.f32.mrb[0].mxu0
      %v507 = vadd.f32 %v318, %v506
      %v508 = vpop.f32.mrb[0].mxu0
      %509 = vmatprep.mubr.bf16.mxu0 0
      %510 = vmatmul.mubr.bf16.gmra.mrb[0].mxu0 %v411
      %v511 = vpop.f32.mrb[0].mxu0
      %v512 = vadd.f32 %v318, %v511
      %v513 = vpop.f32.mrb[0].mxu0
      %v514 = vpop.f32.mrb[0].mxu0
      %v515 = vadd.f32 %v318, %v514
      %v516 = vpop.f32.mrb[0].mxu0
      %517 = vmatprep.mubr.bf16.mxu0 0
      %518 = vmatmul.mubr.bf16.gmra.mrb[0].mxu0 %v414
      %v519 = vpop.f32.mrb[0].mxu0
      %v520 = vadd.f32 %v318, %v519
      %v521 = vpop.f32.mrb[0].mxu0
      %v522 = vpop.f32.mrb[0].mxu0
      %v523 = vadd.f32 %v318, %v522
      %v524 = vpop.f32.mrb[0].mxu0
      %525 = vmatprep.mubr.bf16.mxu0 0
      %526 = vmatmul.mubr.bf16.gmra.mrb[0].mxu0 %v417
      %v527 = vpop.f32.mrb[0].mxu0
      %v528 = vadd.f32 %v318, %v527
      %v529 = vpop.f32.mrb[0].mxu0
      %v530 = vpop.f32.mrb[0].mxu0
      %v531 = vadd.f32 %v318, %v530
      %v532 = vpop.f32.mrb[0].mxu0
      %533 = vmatprep.mubr.bf16.mxu0 0
      %534 = vmatmul.mubr.bf16.gmra.mrb[0].mxu0 %v420
      %v535 = vpop.f32.mrb[0].mxu0
      %v536 = vadd.f32 %v318, %v535
      %v537 = vpop.f32.mrb[0].mxu0
      %v538 = vpop.f32.mrb[0].mxu0
      %v539 = vadd.f32 %v318, %v538
      %v540 = vpop.f32.mrb[0].mxu0
      %541 = vmatprep.mubr.bf16.mxu0 0
      %542 = vmatmul.mubr.bf16.gmra.mrb[0].mxu0 %v423
      %v543 = vpop.f32.mrb[0].mxu0
      %v544 = vadd.f32 %v318, %v543
      %v545 = vpop.f32.mrb[0].mxu0
      %v546 = vpop.f32.mrb[0].mxu0
      %v547 = vadd.f32 %v318, %v546
      %v548 = vpop.f32.mrb[0].mxu0
      %549 = vmatprep.mubr.bf16.mxu0 0
      %550 = vmatmul.mubr.bf16.gmra.mrb[0].mxu0 %v426
      %v551 = vpop.f32.mrb[0].mxu0
      %v552 = vadd.f32 %v318, %v551
      %v553 = vpop.f32.mrb[0].mxu0
      %v554 = vpop.f32.mrb[0].mxu0
      %v555 = vadd.f32 %v318, %v554
      %v556 = vpop.f32.mrb[0].mxu0
      %557 = vmatprep.mubr.bf16.mxu0 0
      %558 = vmatmul.mubr.bf16.gmra.mrb[0].mxu0 %v429
      %v559 = vpop.f32.mrb[0].mxu0
      %v560 = vadd.f32 %v318, %v559
      %v561 = vpop.f32.mrb[0].mxu0
      %v562 = vpop.f32.mrb[0].mxu0
      %v563 = vadd.f32 %v318, %v562
      %v564 = vpop.f32.mrb[0].mxu0
      %565 = vmatprep.mubr.bf16.mxu0 0
      %566 = vmatmul.mubr.bf16.gmra.mrb[0].mxu0 %v432
      %v567 = vpop.f32.mrb[0].mxu0
      %v568 = vadd.f32 %v318, %v567
      %v569 = vpop.f32.mrb[0].mxu0
      %v570 = vpop.f32.mrb[0].mxu0
      %v571 = vadd.f32 %v318, %v570
      %v572 = vpop.f32.mrb[0].mxu0
      %573 = vmatprep.mubr.bf16.mxu0 0
      %574 = vmatmul.mubr.bf16.gmra.mrb[0].mxu0 %v435
      %v575 = vpop.f32.mrb[0].mxu0
      %v576 = vadd.f32 %v318, %v575
      %v577 = vpop.f32.mrb[0].mxu0
      %v578 = vpop.f32.mrb[0].mxu0
      %v579 = vadd.f32 %v318, %v578
      %v580 = vpop.f32.mrb[0].mxu0
      %581 = vmatprep.mubr.bf16.mxu0 0
      %582 = vmatmul.mubr.bf16.gmra.mrb[0].mxu0 %v438
      %v583 = vpop.f32.mrb[0].mxu0
      %v584 = vadd.f32 %v318, %v583
      %v585 = vpop.f32.mrb[0].mxu0
      %v586 = vpop.f32.mrb[0].mxu0
      %v587 = vadd.f32 %v318, %v586
      %v588 = vpop.f32.mrb[0].mxu0
      %589 = vmatprep.mubr.bf16.mxu0 0
      %590 = vmatmul.mubr.bf16.gmra.mrb[0].mxu0 %v441
      %v591 = vpop.f32.mrb[0].mxu0
      %v592 = vadd.f32 %v318, %v591
      %v593 = vpop.f32.mrb[0].mxu0
      %v594 = vpop.f32.mrb[0].mxu0
      %v595 = vadd.f32 %v318, %v594
      %v596 = vpop.f32.mrb[0].mxu0
      %597 = vmatprep.mubr.bf16.mxu0 0
      %598 = vmatmul.mubr.bf16.gmra.mrb[0].mxu0 %v444
      %v599 = vpop.f32.mrb[0].mxu0
      %v600 = vadd.f32 %v318, %v599
      %v601 = vpop.f32.mrb[0].mxu0
      %v602 = vpop.f32.mrb[0].mxu0
      %v603 = vadd.f32 %v318, %v602
      %v604 = vpop.f32.mrb[0].mxu0
      %605 = vmatprep.mubr.bf16.mxu0 0
      %606 = vmatmul.mubr.bf16.gmra.mrb[0].mxu0 %v447
      %v607 = vpop.f32.mrb[0].mxu0
      %v608 = vadd.f32 %v318, %v607
      %v609 = vpop.f32.mrb[0].mxu0
      %v610 = vpop.f32.mrb[0].mxu0
      %v611 = vadd.f32 %v318, %v610
      %v612 = vpop.f32.mrb[0].mxu0
      %613 = vdwg.mxu0
      %v614 = vmax.f32 %v488, 0.0
      %v615 = vmax.f32 %v491, 0.0
      %v616 = vmax.f32 %v496, 0.0
      %v617 = vmax.f32 %v499, 0.0
      %v618 = vmax.f32 %v504, 0.0
      %v619 = vmax.f32 %v507, 0.0
      %v620 = vmax.f32 %v512, 0.0
      %v621 = vmax.f32 %v515, 0.0
      %v622 = vmax.f32 %v520, 0.0
      %v623 = vmax.f32 %v523, 0.0
      %v624 = vmax.f32 %v528, 0.0
      %v625 = vmax.f32 %v531, 0.0
      %v626 = vmax.f32 %v536, 0.0
      %v627 = vmax.f32 %v539, 0.0
      %v628 = vmax.f32 %v544, 0.0
      %v629 = vmax.f32 %v547, 0.0
      %v630 = vmax.f32 %v552, 0.0
      %v631 = vmax.f32 %v555, 0.0
      %v632 = vmax.f32 %v560, 0.0
      %v633 = vmax.f32 %v563, 0.0
      %v634 = vmax.f32 %v568, 0.0
      %v635 = vmax.f32 %v571, 0.0
      %v636 = vmax.f32 %v576, 0.0
      %v637 = vmax.f32 %v579, 0.0
      %v638 = vmax.f32 %v584, 0.0
      %v639 = vmax.f32 %v587, 0.0
      %v640 = vmax.f32 %v592, 0.0
      %v641 = vmax.f32 %v595, 0.0
      %v642 = vmax.f32 %v600, 0.0
      %v643 = vmax.f32 %v603, 0.0
      %v644 = vmax.f32 %v608, 0.0
      %v645 = vmax.f32 %v611, 0.0
      %646 = vst.msk [vmem:[#allocation2] sm:$0xff] %vm400, 0.0
      %647 = vst.msk [vmem:[#allocation2 + $0x8] sm:$0xff] %vm400, 0.0
      %vm648 = vcmask 58368
      %649 = vst.msk [vmem:[#allocation2 + $0x10] sm:$0x3] %vm648, 0.0
      %650 = vst.msk [vmem:[#allocation2 + $0x18] sm:$0xff] %vm400, 0.0
      %651 = vst.msk [vmem:[#allocation2 + $0x20] sm:$0xff] %vm400, 0.0
      %652 = vst.msk [vmem:[#allocation2 + $0x28] sm:$0x3] %vm648, 0.0
      %653 = vst.msk [vmem:[#allocation2 + $0x30] sm:$0xff] %vm400, 0.0
      %654 = vst.msk [vmem:[#allocation2 + $0x38] sm:$0xff] %vm400, 0.0
      %655 = vst.msk [vmem:[#allocation2 + $0x40] sm:$0x3] %vm648, 0.0
      %656 = vst.msk [vmem:[#allocation2 + $0x48] sm:$0xff] %vm400, 0.0
      %657 = vst.msk [vmem:[#allocation2 + $0x50] sm:$0xff] %vm400, 0.0
      %658 = vst.msk [vmem:[#allocation2 + $0x58] sm:$0x3] %vm648, 0.0
      %659 = vst.msk [vmem:[#allocation2 + $0x60] sm:$0xff] %vm400, 0.0
      %660 = vst.msk [vmem:[#allocation2 + $0x68] sm:$0xff] %vm400, 0.0
      %661 = vst.msk [vmem:[#allocation2 + $0x70] sm:$0x3] %vm648, 0.0
      %662 = vst.msk [vmem:[#allocation2 + $0x78] sm:$0xff] %vm400, 0.0
      %663 = vst.msk [vmem:[#allocation2 + $0x80] sm:$0xff] %vm400, 0.0
      %664 = vst.msk [vmem:[#allocation2 + $0x88] sm:$0x3] %vm648, 0.0
      %665 = vst.msk [vmem:[#allocation2 + $0x90] sm:$0xff] %vm400, 0.0
      %666 = vst.msk [vmem:[#allocation2 + $0x98] sm:$0xff] %vm400, 0.0
      %667 = vst.msk [vmem:[#allocation2 + $0xa0] sm:$0x3] %vm648, 0.0
      %668 = vst.msk [vmem:[#allocation2 + $0xa8] sm:$0xff] %vm400, 0.0
      %669 = vst.msk [vmem:[#allocation2 + $0xb0] sm:$0xff] %vm400, 0.0
      %670 = vst.msk [vmem:[#allocation2 + $0xb8] sm:$0x3] %vm648, 0.0
      %671 = vst.msk [vmem:[#allocation2 + $0xc0] sm:$0xff] %vm400, 0.0
      %672 = vst.msk [vmem:[#allocation2 + $0xc8] sm:$0xff] %vm400, 0.0
      %673 = vst.msk [vmem:[#allocation2 + $0xd0] sm:$0x3] %vm648, 0.0
      %674 = vst.msk [vmem:[#allocation2 + $0xd8] sm:$0xff] %vm400, 0.0
      %675 = vst.msk [vmem:[#allocation2 + $0xe0] sm:$0xff] %vm400, 0.0
      %676 = vst.msk [vmem:[#allocation2 + $0xe8] sm:$0x3] %vm648, 0.0
      %677 = vst.msk [vmem:[#allocation2 + $0xf0] sm:$0xff] %vm400, 0.0
      %678 = vst.msk [vmem:[#allocation2 + $0xf8] sm:$0xff] %vm400, 0.0
      %679 = vst.msk [vmem:[#allocation2 + $0x100] sm:$0x3] %vm648, 0.0
      %680 = vst.msk [vmem:[#allocation2 + $0x108] sm:$0xff] %vm400, 0.0
      %681 = vst.msk [vmem:[#allocation2 + $0x110] sm:$0xff] %vm400, 0.0
      %682 = vst.msk [vmem:[#allocation2 + $0x118] sm:$0x3] %vm648, 0.0
      %683 = vst.msk [vmem:[#allocation2 + $0x120] sm:$0xff] %vm400, 0.0
      %684 = vst.msk [vmem:[#allocation2 + $0x128] sm:$0xff] %vm400, 0.0
      %685 = vst.msk [vmem:[#allocation2 + $0x130] sm:$0x3] %vm648, 0.0
      %686 = vst.msk [vmem:[#allocation2 + $0x138] sm:$0xff] %vm400, 0.0
      %687 = vst.msk [vmem:[#allocation2 + $0x140] sm:$0xff] %vm400, 0.0
      %688 = vst.msk [vmem:[#allocation2 + $0x148] sm:$0x3] %vm648, 0.0
      %689 = vst.msk [vmem:[#allocation2 + $0x150] sm:$0xff] %vm400, 0.0
      %690 = vst.msk [vmem:[#allocation2 + $0x158] sm:$0xff] %vm400, 0.0
      %691 = vst.msk [vmem:[#allocation2 + $0x160] sm:$0x3] %vm648, 0.0
      %692 = vst.msk [vmem:[#allocation2 + $0x168] sm:$0xff] %vm400, 0.0
      %693 = vst.msk [vmem:[#allocation2 + $0x170] sm:$0xff] %vm400, 0.0
      %694 = vst.msk [vmem:[#allocation2 + $0x178] sm:$0x3] %vm648, 0.0
      %695 = vst.msk [vmem:[#allocation2 + $0x180] sm:$0xff] %vm400, 0.0
      %696 = vst.msk [vmem:[#allocation2 + $0x188] sm:$0xff] %vm400, 0.0
      %697 = vst.msk [vmem:[#allocation2 + $0x190] sm:$0x3] %vm648, 0.0
      %698 = vst.msk [vmem:[#allocation2 + $0x198] sm:$0xff] %vm400, 0.0
      %699 = vst.msk [vmem:[#allocation2 + $0x1a0] sm:$0xff] %vm400, 0.0
      %700 = vst.msk [vmem:[#allocation2 + $0x1a8] sm:$0x3] %vm648, 0.0
      %s701 = scalar_lea.vmem [#allocation2], 24
      %702 = vst.msk [vmem:[%s701 + $0x1] sm:$0xff] %vm400, %v614
      %703 = vst.msk [vmem:[%s701 + $0x9] sm:$0xff] %vm400, %v615
      %704 = vst.msk [vmem:[%s701 + $0x19] sm:$0xff] %vm400, %v616
      %705 = vst.msk [vmem:[%s701 + $0x21] sm:$0xff] %vm400, %v617
      %706 = vst.msk [vmem:[%s701 + $0x31] sm:$0xff] %vm400, %v618
      %707 = vst.msk [vmem:[%s701 + $0x39] sm:$0xff] %vm400, %v619
      %708 = vst.msk [vmem:[%s701 + $0x49] sm:$0xff] %vm400, %v620
      %709 = vst.msk [vmem:[%s701 + $0x51] sm:$0xff] %vm400, %v621
      %710 = vst.msk [vmem:[%s701 + $0x61] sm:$0xff] %vm400, %v622
      %711 = vst.msk [vmem:[%s701 + $0x69] sm:$0xff] %vm400, %v623
      %712 = vst.msk [vmem:[%s701 + $0x79] sm:$0xff] %vm400, %v624
      %713 = vst.msk [vmem:[%s701 + $0x81] sm:$0xff] %vm400, %v625
      %714 = vst.msk [vmem:[%s701 + $0x91] sm:$0xff] %vm400, %v626
      %715 = vst.msk [vmem:[%s701 + $0x99] sm:$0xff] %vm400, %v627
      %716 = vst.msk [vmem:[%s701 + $0xa9] sm:$0xff] %vm400, %v628
      %717 = vst.msk [vmem:[%s701 + $0xb1] sm:$0xff] %vm400, %v629
      %718 = vst.msk [vmem:[%s701 + $0xc1] sm:$0xff] %vm400, %v630
      %719 = vst.msk [vmem:[%s701 + $0xc9] sm:$0xff] %vm400, %v631
      %720 = vst.msk [vmem:[%s701 + $0xd9] sm:$0xff] %vm400, %v632
      %721 = vst.msk [vmem:[%s701 + $0xe1] sm:$0xff] %vm400, %v633
      %722 = vst.msk [vmem:[%s701 + $0xf1] sm:$0xff] %vm400, %v634
      %723 = vst.msk [vmem:[%s701 + $0xf9] sm:$0xff] %vm400, %v635
      %724 = vst.msk [vmem:[%s701 + $0x109] sm:$0xff] %vm400, %v636
      %725 = vst.msk [vmem:[%s701 + $0x111] sm:$0xff] %vm400, %v637
      %726 = vst.msk [vmem:[%s701 + $0x121] sm:$0xff] %vm400, %v638
      %727 = vst.msk [vmem:[%s701 + $0x129] sm:$0xff] %vm400, %v639
      %728 = vst.msk [vmem:[%s701 + $0x139] sm:$0xff] %vm400, %v640
      %729 = vst.msk [vmem:[%s701 + $0x141] sm:$0xff] %vm400, %v641
      %730 = vst.msk [vmem:[%s701 + $0x151] sm:$0xff] %vm400, %v642
      %731 = vst.msk [vmem:[%s701 + $0x159] sm:$0xff] %vm400, %v643
      %732 = vst.msk [vmem:[%s701 + $0x169] sm:$0xff] %vm400, %v644
      %733 = vst.msk [vmem:[%s701 + $0x171] sm:$0xff] %vm400, %v645
      %v734 = vld [vmem:[#allocation2] sm:$0xff]
      %v735 = vld [vmem:[#allocation2 + $0x8] sm:$0xff]
      %v736 = vld [vmem:[#allocation2 + $0x18] sm:$0xff]
      %v737 = vld [vmem:[#allocation2 + $0x20] sm:$0xff]
      %v738 = vld [vmem:[#allocation2 + $0x30] sm:$0xff]
      %v739 = vld [vmem:[#allocation2 + $0x38] sm:$0xff]
      %v740 = vld [vmem:[#allocation2 + $0x48] sm:$0xff]
      %v741 = vld [vmem:[#allocation2 + $0x50] sm:$0xff]
      %v742 = vld [vmem:[#allocation2 + $0x60] sm:$0xff]
      %v743 = vld [vmem:[#allocation2 + $0x68] sm:$0xff]
      %v744 = vld [vmem:[#allocation2 + $0x78] sm:$0xff]
      %v745 = vld [vmem:[#allocation2 + $0x80] sm:$0xff]
      %v746 = vld [vmem:[#allocation2 + $0x90] sm:$0xff]
      %v747 = vld [vmem:[#allocation2 + $0x98] sm:$0xff]
      %v748 = vld [vmem:[#allocation2 + $0xa8] sm:$0xff]
      %v749 = vld [vmem:[#allocation2 + $0xb0] sm:$0xff]
      %v750 = vld [vmem:[#allocation2 + $0xc0] sm:$0xff]
      %v751 = vld [vmem:[#allocation2 + $0xc8] sm:$0xff]
      %v752 = vld [vmem:[#allocation2 + $0xd8] sm:$0xff]
      %v753 = vld [vmem:[#allocation2 + $0xe0] sm:$0xff]
      %v754 = vld [vmem:[#allocation2 + $0xf0] sm:$0xff]
      %v755 = vld [vmem:[#allocation2 + $0xf8] sm:$0xff]
      %v756 = vld [vmem:[#allocation2 + $0x108] sm:$0xff]
      %v757 = vld [vmem:[#allocation2 + $0x110] sm:$0xff]
      %v758 = vld [vmem:[#allocation2 + $0x120] sm:$0xff]
      %v759 = vld [vmem:[#allocation2 + $0x128] sm:$0xff]
      %v760 = vld [vmem:[#allocation2 + $0x138] sm:$0xff]
      %v761 = vld [vmem:[#allocation2 + $0x140] sm:$0xff]
      %v762 = vld [vmem:[#allocation2 + $0x150] sm:$0xff]
      %v763 = vld [vmem:[#allocation2 + $0x158] sm:$0xff]
      %v764 = vld [vmem:[#allocation2 + $0x168] sm:$0xff]
      %v765 = vld [vmem:[#allocation2 + $0x170] sm:$0xff]
      %v766 = vld [vmem:[%s3] sm:$0x1]
      %v767 = vlaneseq
      %v768 = vshrl.u32 %v767, 7
      %v769 = vsub.s32 0, %v768
      %v770 = vrot.slane %v766, %v769
      %v771 = vmul.f32 %v734, %v770
      %v772 = vmul.f32 %v735, %v770
      %v773 = vmul.f32 %v736, %v770
      %v774 = vmul.f32 %v737, %v770
      %v775 = vmul.f32 %v738, %v770
      %v776 = vmul.f32 %v739, %v770
      %v777 = vmul.f32 %v740, %v770
      %v778 = vmul.f32 %v741, %v770
      %v779 = vmul.f32 %v742, %v770
      %v780 = vmul.f32 %v743, %v770
      %v781 = vmul.f32 %v744, %v770
      %v782 = vmul.f32 %v745, %v770
      %v783 = vmul.f32 %v746, %v770
      %v784 = vmul.f32 %v747, %v770
      %v785 = vmul.f32 %v748, %v770
      %v786 = vmul.f32 %v749, %v770
      %v787 = vmul.f32 %v750, %v770
      %v788 = vmul.f32 %v751, %v770
      %v789 = vmul.f32 %v752, %v770
      %v790 = vmul.f32 %v753, %v770
      %v791 = vmul.f32 %v754, %v770
      %v792 = vmul.f32 %v755, %v770
      %v793 = vmul.f32 %v756, %v770
      %v794 = vmul.f32 %v757, %v770
      %v795 = vmul.f32 %v758, %v770
      %v796 = vmul.f32 %v759, %v770
      %v797 = vmul.f32 %v760, %v770
      %v798 = vmul.f32 %v761, %v770
      %v799 = vmul.f32 %v762, %v770
      %v800 = vmul.f32 %v763, %v770
      %v801 = vmul.f32 %v764, %v770
      %v802 = vmul.f32 %v765, %v770
      %v803 = vadd.f32 %v771, 0.0
      %v804 = vadd.f32 %v772, 0.0
      %v805 = vadd.f32 %v773, 0.0
      %v806 = vadd.f32 %v774, 0.0
      %v807 = vadd.f32 %v775, 0.0
      %v808 = vadd.f32 %v776, 0.0
      %v809 = vadd.f32 %v777, 0.0
      %v810 = vadd.f32 %v778, 0.0
      %v811 = vadd.f32 %v779, 0.0
      %v812 = vadd.f32 %v780, 0.0
      %v813 = vadd.f32 %v781, 0.0
      %v814 = vadd.f32 %v782, 0.0
      %v815 = vadd.f32 %v783, 0.0
      %v816 = vadd.f32 %v784, 0.0
      %v817 = vadd.f32 %v785, 0.0
      %v818 = vadd.f32 %v786, 0.0
      %v819 = vadd.f32 %v787, 0.0
      %v820 = vadd.f32 %v788, 0.0
      %v821 = vadd.f32 %v789, 0.0
      %v822 = vadd.f32 %v790, 0.0
      %v823 = vadd.f32 %v791, 0.0
      %v824 = vadd.f32 %v792, 0.0
      %v825 = vadd.f32 %v793, 0.0
      %v826 = vadd.f32 %v794, 0.0
      %v827 = vadd.f32 %v795, 0.0
      %v828 = vadd.f32 %v796, 0.0
      %v829 = vadd.f32 %v797, 0.0
      %v830 = vadd.f32 %v798, 0.0
      %v831 = vadd.f32 %v799, 0.0
      %v832 = vadd.f32 %v800, 0.0
      %v833 = vadd.f32 %v801, 0.0
      %v834 = vadd.f32 %v802, 0.0
      %v835 = vld [vmem:[#allocation2 + $0x1] sm:$0xff]
      %v836 = vld [vmem:[#allocation2 + $0x9] sm:$0xff]
      %v837 = vld [vmem:[#allocation2 + $0x19] sm:$0xff]
      %v838 = vld [vmem:[#allocation2 + $0x21] sm:$0xff]
      %v839 = vld [vmem:[#allocation2 + $0x31] sm:$0xff]
      %v840 = vld [vmem:[#allocation2 + $0x39] sm:$0xff]
      %v841 = vld [vmem:[#allocation2 + $0x49] sm:$0xff]
      %v842 = vld [vmem:[#allocation2 + $0x51] sm:$0xff]
      %v843 = vld [vmem:[#allocation2 + $0x61] sm:$0xff]
      %v844 = vld [vmem:[#allocation2 + $0x69] sm:$0xff]
      %v845 = vld [vmem:[#allocation2 + $0x79] sm:$0xff]
      %v846 = vld [vmem:[#allocation2 + $0x81] sm:$0xff]
      %v847 = vld [vmem:[#allocation2 + $0x91] sm:$0xff]
      %v848 = vld [vmem:[#allocation2 + $0x99] sm:$0xff]
      %v849 = vld [vmem:[#allocation2 + $0xa9] sm:$0xff]
      %v850 = vld [vmem:[#allocation2 + $0xb1] sm:$0xff]
      %v851 = vld [vmem:[#allocation2 + $0xc1] sm:$0xff]
      %v852 = vld [vmem:[#allocation2 + $0xc9] sm:$0xff]
      %v853 = vld [vmem:[#allocation2 + $0xd9] sm:$0xff]
      %v854 = vld [vmem:[#allocation2 + $0xe1] sm:$0xff]
      %v855 = vld [vmem:[#allocation2 + $0xf1] sm:$0xff]
      %v856 = vld [vmem:[#allocation2 + $0xf9] sm:$0xff]
      %v857 = vld [vmem:[#allocation2 + $0x109] sm:$0xff]
      %v858 = vld [vmem:[#allocation2 + $0x111] sm:$0xff]
      %v859 = vld [vmem:[#allocation2 + $0x121] sm:$0xff]
      %v860 = vld [vmem:[#allocation2 + $0x129] sm:$0xff]
      %v861 = vld [vmem:[#allocation2 + $0x139] sm:$0xff]
      %v862 = vld [vmem:[#allocation2 + $0x141] sm:$0xff]
      %v863 = vld [vmem:[#allocation2 + $0x151] sm:$0xff]
      %v864 = vld [vmem:[#allocation2 + $0x159] sm:$0xff]
      %v865 = vld [vmem:[#allocation2 + $0x169] sm:$0xff]
      %v866 = vld [vmem:[#allocation2 + $0x171] sm:$0xff]
      %v867 = vld [vmem:[%s3 + $0x1] sm:$0x1]
      %v868 = vlaneseq
      %v869 = vshrl.u32 %v868, 7
      %v870 = vsub.s32 0, %v869
      %v871 = vrot.slane %v867, %v870
      %v872 = vmul.f32 %v835, %v871
      %v873 = vmul.f32 %v836, %v871
      %v874 = vmul.f32 %v837, %v871
      %v875 = vmul.f32 %v838, %v871
      %v876 = vmul.f32 %v839, %v871
      %v877 = vmul.f32 %v840, %v871
      %v878 = vmul.f32 %v841, %v871
      %v879 = vmul.f32 %v842, %v871
      %v880 = vmul.f32 %v843, %v871
      %v881 = vmul.f32 %v844, %v871
      %v882 = vmul.f32 %v845, %v871
      %v883 = vmul.f32 %v846, %v871
      %v884 = vmul.f32 %v847, %v871
      %v885 = vmul.f32 %v848, %v871
      %v886 = vmul.f32 %v849, %v871
      %v887 = vmul.f32 %v850, %v871
      %v888 = vmul.f32 %v851, %v871
      %v889 = vmul.f32 %v852, %v871
      %v890 = vmul.f32 %v853, %v871
      %v891 = vmul.f32 %v854, %v871
      %v892 = vmul.f32 %v855, %v871
      %v893 = vmul.f32 %v856, %v871
      %v894 = vmul.f32 %v857, %v871
      %v895 = vmul.f32 %v858, %v871
      %v896 = vmul.f32 %v859, %v871
      %v897 = vmul.f32 %v860, %v871
      %v898 = vmul.f32 %v861, %v871
      %v899 = vmul.f32 %v862, %v871
      %v900 = vmul.f32 %v863, %v871
      %v901 = vmul.f32 %v864, %v871
      %v902 = vmul.f32 %v865, %v871
      %v903 = vmul.f32 %v866, %v871
      %v904 = vadd.f32 %v803, %v872
      %v905 = vadd.f32 %v804, %v873
      %v906 = vadd.f32 %v805, %v874
      %v907 = vadd.f32 %v806, %v875
      %v908 = vadd.f32 %v807, %v876
      %v909 = vadd.f32 %v808, %v877
      %v910 = vadd.f32 %v809, %v878
      %v911 = vadd.f32 %v810, %v879
      %v912 = vadd.f32 %v811, %v880
      %v913 = vadd.f32 %v812, %v881
      %v914 = vadd.f32 %v813, %v882
      %v915 = vadd.f32 %v814, %v883
      %v916 = vadd.f32 %v815, %v884
      %v917 = vadd.f32 %v816, %v885
      %v918 = vadd.f32 %v817, %v886
      %v919 = vadd.f32 %v818, %v887
      %v920 = vadd.f32 %v819, %v888
      %v921 = vadd.f32 %v820, %v889
      %v922 = vadd.f32 %v821, %v890
      %v923 = vadd.f32 %v822, %v891
      %v924 = vadd.f32 %v823, %v892
      %v925 = vadd.f32 %v824, %v893
      %v926 = vadd.f32 %v825, %v894
      %v927 = vadd.f32 %v826, %v895
      %v928 = vadd.f32 %v827, %v896
      %v929 = vadd.f32 %v828, %v897
      %v930 = vadd.f32 %v829, %v898
      %v931 = vadd.f32 %v830, %v899
      %v932 = vadd.f32 %v831, %v900
      %v933 = vadd.f32 %v832, %v901
      %v934 = vadd.f32 %v833, %v902
      %v935 = vadd.f32 %v834, %v903
      %v936 = vld [vmem:[#allocation2 + $0x2] sm:$0xff]
      %v937 = vld [vmem:[#allocation2 + $0xa] sm:$0xff]
      %v938 = vld [vmem:[#allocation2 + $0x1a] sm:$0xff]
      %v939 = vld [vmem:[#allocation2 + $0x22] sm:$0xff]
      %v940 = vld [vmem:[#allocation2 + $0x32] sm:$0xff]
      %v941 = vld [vmem:[#allocation2 + $0x3a] sm:$0xff]
      %v942 = vld [vmem:[#allocation2 + $0x4a] sm:$0xff]
      %v943 = vld [vmem:[#allocation2 + $0x52] sm:$0xff]
      %v944 = vld [vmem:[#allocation2 + $0x62] sm:$0xff]
      %v945 = vld [vmem:[#allocation2 + $0x6a] sm:$0xff]
      %v946 = vld [vmem:[#allocation2 + $0x7a] sm:$0xff]
      %v947 = vld [vmem:[#allocation2 + $0x82] sm:$0xff]
      %v948 = vld [vmem:[#allocation2 + $0x92] sm:$0xff]
      %v949 = vld [vmem:[#allocation2 + $0x9a] sm:$0xff]
      %v950 = vld [vmem:[#allocation2 + $0xaa] sm:$0xff]
      %v951 = vld [vmem:[#allocation2 + $0xb2] sm:$0xff]
      %v952 = vld [vmem:[#allocation2 + $0xc2] sm:$0xff]
      %v953 = vld [vmem:[#allocation2 + $0xca] sm:$0xff]
      %v954 = vld [vmem:[#allocation2 + $0xda] sm:$0xff]
      %v955 = vld [vmem:[#allocation2 + $0xe2] sm:$0xff]
      %v956 = vld [vmem:[#allocation2 + $0xf2] sm:$0xff]
      %v957 = vld [vmem:[#allocation2 + $0xfa] sm:$0xff]
      %v958 = vld [vmem:[#allocation2 + $0x10a] sm:$0xff]
      %v959 = vld [vmem:[#allocation2 + $0x112] sm:$0xff]
      %v960 = vld [vmem:[#allocation2 + $0x122] sm:$0xff]
      %v961 = vld [vmem:[#allocation2 + $0x12a] sm:$0xff]
      %v962 = vld [vmem:[#allocation2 + $0x13a] sm:$0xff]
      %v963 = vld [vmem:[#allocation2 + $0x142] sm:$0xff]
      %v964 = vld [vmem:[#allocation2 + $0x152] sm:$0xff]
      %v965 = vld [vmem:[#allocation2 + $0x15a] sm:$0xff]
      %v966 = vld [vmem:[#allocation2 + $0x16a] sm:$0xff]
      %v967 = vld [vmem:[#allocation2 + $0x172] sm:$0xff]
      %v968 = vld [vmem:[%s3 + $0x2] sm:$0x1]
      %v969 = vlaneseq
      %v970 = vshrl.u32 %v969, 7
      %v971 = vsub.s32 0, %v970
      %v972 = vrot.slane %v968, %v971
      %v973 = vmul.f32 %v936, %v972
      %v974 = vmul.f32 %v937, %v972
      %v975 = vmul.f32 %v938, %v972
      %v976 = vmul.f32 %v939, %v972
      %v977 = vmul.f32 %v940, %v972
      %v978 = vmul.f32 %v941, %v972
      %v979 = vmul.f32 %v942, %v972
      %v980 = vmul.f32 %v943, %v972
      %v981 = vmul.f32 %v944, %v972
      %v982 = vmul.f32 %v945, %v972
      %v983 = vmul.f32 %v946, %v972
      %v984 = vmul.f32 %v947, %v972
      %v985 = vmul.f32 %v948, %v972
      %v986 = vmul.f32 %v949, %v972
      %v987 = vmul.f32 %v950, %v972
      %v988 = vmul.f32 %v951, %v972
      %v989 = vmul.f32 %v952, %v972
      %v990 = vmul.f32 %v953, %v972
      %v991 = vmul.f32 %v954, %v972
      %v992 = vmul.f32 %v955, %v972
      %v993 = vmul.f32 %v956, %v972
      %v994 = vmul.f32 %v957, %v972
      %v995 = vmul.f32 %v958, %v972
      %v996 = vmul.f32 %v959, %v972
      %v997 = vmul.f32 %v960, %v972
      %v998 = vmul.f32 %v961, %v972
      %v999 = vmul.f32 %v962, %v972
      %v1000 = vmul.f32 %v963, %v972
      %v1001 = vmul.f32 %v964, %v972
      %v1002 = vmul.f32 %v965, %v972
      %v1003 = vmul.f32 %v966, %v972
      %v1004 = vmul.f32 %v967, %v972
      %v1005 = vadd.f32 %v904, %v973
      %v1006 = vadd.f32 %v905, %v974
      %v1007 = vadd.f32 %v906, %v975
      %v1008 = vadd.f32 %v907, %v976
      %v1009 = vadd.f32 %v908, %v977
      %v1010 = vadd.f32 %v909, %v978
      %v1011 = vadd.f32 %v910, %v979
      %v1012 = vadd.f32 %v911, %v980
      %v1013 = vadd.f32 %v912, %v981
      %v1014 = vadd.f32 %v913, %v982
      %v1015 = vadd.f32 %v914, %v983
      %v1016 = vadd.f32 %v915, %v984
      %v1017 = vadd.f32 %v916, %v985
      %v1018 = vadd.f32 %v917, %v986
      %v1019 = vadd.f32 %v918, %v987
      %v1020 = vadd.f32 %v919, %v988
      %v1021 = vadd.f32 %v920, %v989
      %v1022 = vadd.f32 %v921, %v990
      %v1023 = vadd.f32 %v922, %v991
      %v1024 = vadd.f32 %v923, %v992
      %v1025 = vadd.f32 %v924, %v993
      %v1026 = vadd.f32 %v925, %v994
      %v1027 = vadd.f32 %v926, %v995
      %v1028 = vadd.f32 %v927, %v996
      %v1029 = vadd.f32 %v928, %v997
      %v1030 = vadd.f32 %v929, %v998
      %v1031 = vadd.f32 %v930, %v999
      %v1032 = vadd.f32 %v931, %v1000
      %v1033 = vadd.f32 %v932, %v1001
      %v1034 = vadd.f32 %v933, %v1002
      %v1035 = vadd.f32 %v934, %v1003
      %v1036 = vadd.f32 %v935, %v1004
      %v1037 = vld [vmem:[%s701] sm:$0xff]
      %v1038 = vld [vmem:[%s701 + $0x8] sm:$0xff]
      %v1039 = vld [vmem:[%s701 + $0x18] sm:$0xff]
      %v1040 = vld [vmem:[%s701 + $0x20] sm:$0xff]
      %v1041 = vld [vmem:[%s701 + $0x30] sm:$0xff]
      %v1042 = vld [vmem:[%s701 + $0x38] sm:$0xff]
      %v1043 = vld [vmem:[%s701 + $0x48] sm:$0xff]
      %v1044 = vld [vmem:[%s701 + $0x50] sm:$0xff]
      %v1045 = vld [vmem:[%s701 + $0x60] sm:$0xff]
      %v1046 = vld [vmem:[%s701 + $0x68] sm:$0xff]
      %v1047 = vld [vmem:[%s701 + $0x78] sm:$0xff]
      %v1048 = vld [vmem:[%s701 + $0x80] sm:$0xff]
      %v1049 = vld [vmem:[%s701 + $0x90] sm:$0xff]
      %v1050 = vld [vmem:[%s701 + $0x98] sm:$0xff]
      %v1051 = vld [vmem:[%s701 + $0xa8] sm:$0xff]
      %v1052 = vld [vmem:[%s701 + $0xb0] sm:$0xff]
      %v1053 = vld [vmem:[%s701 + $0xc0] sm:$0xff]
      %v1054 = vld [vmem:[%s701 + $0xc8] sm:$0xff]
      %v1055 = vld [vmem:[%s701 + $0xd8] sm:$0xff]
      %v1056 = vld [vmem:[%s701 + $0xe0] sm:$0xff]
      %v1057 = vld [vmem:[%s701 + $0xf0] sm:$0xff]
      %v1058 = vld [vmem:[%s701 + $0xf8] sm:$0xff]
      %v1059 = vld [vmem:[%s701 + $0x108] sm:$0xff]
      %v1060 = vld [vmem:[%s701 + $0x110] sm:$0xff]
      %v1061 = vld [vmem:[%s701 + $0x120] sm:$0xff]
      %v1062 = vld [vmem:[%s701 + $0x128] sm:$0xff]
      %v1063 = vld [vmem:[%s701 + $0x138] sm:$0xff]
      %v1064 = vld [vmem:[%s701 + $0x140] sm:$0xff]
      %v1065 = vld [vmem:[%s701 + $0x150] sm:$0xff]
      %v1066 = vld [vmem:[%s701 + $0x158] sm:$0xff]
      %v1067 = vld [vmem:[%s701 + $0x168] sm:$0xff]
      %v1068 = vld [vmem:[%s701 + $0x170] sm:$0xff]
      %v1069 = vld [vmem:[%s3 + $0x3] sm:$0x1]
      %v1070 = vlaneseq
      %v1071 = vshrl.u32 %v1070, 7
      %v1072 = vsub.s32 0, %v1071
      %v1073 = vrot.slane %v1069, %v1072
      %v1074 = vmul.f32 %v1037, %v1073
      %v1075 = vmul.f32 %v1038, %v1073
      %v1076 = vmul.f32 %v1039, %v1073
      %v1077 = vmul.f32 %v1040, %v1073
      %v1078 = vmul.f32 %v1041, %v1073
      %v1079 = vmul.f32 %v1042, %v1073
      %v1080 = vmul.f32 %v1043, %v1073
      %v1081 = vmul.f32 %v1044, %v1073
      %v1082 = vmul.f32 %v1045, %v1073
      %v1083 = vmul.f32 %v1046, %v1073
      %v1084 = vmul.f32 %v1047, %v1073
      %v1085 = vmul.f32 %v1048, %v1073
      %v1086 = vmul.f32 %v1049, %v1073
      %v1087 = vmul.f32 %v1050, %v1073
      %v1088 = vmul.f32 %v1051, %v1073
      %v1089 = vmul.f32 %v1052, %v1073
      %v1090 = vmul.f32 %v1053, %v1073
      %v1091 = vmul.f32 %v1054, %v1073
      %v1092 = vmul.f32 %v1055, %v1073
      %v1093 = vmul.f32 %v1056, %v1073
      %v1094 = vmul.f32 %v1057, %v1073
      %v1095 = vmul.f32 %v1058, %v1073
      %v1096 = vmul.f32 %v1059, %v1073
      %v1097 = vmul.f32 %v1060, %v1073
      %v1098 = vmul.f32 %v1061, %v1073
      %v1099 = vmul.f32 %v1062, %v1073
      %v1100 = vmul.f32 %v1063, %v1073
      %v1101 = vmul.f32 %v1064, %v1073
      %v1102 = vmul.f32 %v1065, %v1073
      %v1103 = vmul.f32 %v1066, %v1073
      %v1104 = vmul.f32 %v1067, %v1073
      %v1105 = vmul.f32 %v1068, %v1073
      %v1106 = vadd.f32 %v1005, %v1074
      %v1107 = vadd.f32 %v1006, %v1075
      %v1108 = vadd.f32 %v1007, %v1076
      %v1109 = vadd.f32 %v1008, %v1077
      %v1110 = vadd.f32 %v1009, %v1078
      %v1111 = vadd.f32 %v1010, %v1079
      %v1112 = vadd.f32 %v1011, %v1080
      %v1113 = vadd.f32 %v1012, %v1081
      %v1114 = vadd.f32 %v1013, %v1082
      %v1115 = vadd.f32 %v1014, %v1083
      %v1116 = vadd.f32 %v1015, %v1084
      %v1117 = vadd.f32 %v1016, %v1085
      %v1118 = vadd.f32 %v1017, %v1086
      %v1119 = vadd.f32 %v1018, %v1087
      %v1120 = vadd.f32 %v1019, %v1088
      %v1121 = vadd.f32 %v1020, %v1089
      %v1122 = vadd.f32 %v1021, %v1090
      %v1123 = vadd.f32 %v1022, %v1091
      %v1124 = vadd.f32 %v1023, %v1092
      %v1125 = vadd.f32 %v1024, %v1093
      %v1126 = vadd.f32 %v1025, %v1094
      %v1127 = vadd.f32 %v1026, %v1095
      %v1128 = vadd.f32 %v1027, %v1096
      %v1129 = vadd.f32 %v1028, %v1097
      %v1130 = vadd.f32 %v1029, %v1098
      %v1131 = vadd.f32 %v1030, %v1099
      %v1132 = vadd.f32 %v1031, %v1100
      %v1133 = vadd.f32 %v1032, %v1101
      %v1134 = vadd.f32 %v1033, %v1102
      %v1135 = vadd.f32 %v1034, %v1103
      %v1136 = vadd.f32 %v1035, %v1104
      %v1137 = vadd.f32 %v1036, %v1105
      %v1138 = vld [vmem:[%s701 + $0x1] sm:$0xff]
      %v1139 = vld [vmem:[%s701 + $0x9] sm:$0xff]
      %v1140 = vld [vmem:[%s701 + $0x19] sm:$0xff]
      %v1141 = vld [vmem:[%s701 + $0x21] sm:$0xff]
      %v1142 = vld [vmem:[%s701 + $0x31] sm:$0xff]
      %v1143 = vld [vmem:[%s701 + $0x39] sm:$0xff]
      %v1144 = vld [vmem:[%s701 + $0x49] sm:$0xff]
      %v1145 = vld [vmem:[%s701 + $0x51] sm:$0xff]
      %v1146 = vld [vmem:[%s701 + $0x61] sm:$0xff]
      %v1147 = vld [vmem:[%s701 + $0x69] sm:$0xff]
      %v1148 = vld [vmem:[%s701 + $0x79] sm:$0xff]
      %v1149 = vld [vmem:[%s701 + $0x81] sm:$0xff]
      %v1150 = vld [vmem:[%s701 + $0x91] sm:$0xff]
      %v1151 = vld [vmem:[%s701 + $0x99] sm:$0xff]
      %v1152 = vld [vmem:[%s701 + $0xa9] sm:$0xff]
      %v1153 = vld [vmem:[%s701 + $0xb1] sm:$0xff]
      %v1154 = vld [vmem:[%s701 + $0xc1] sm:$0xff]
      %v1155 = vld [vmem:[%s701 + $0xc9] sm:$0xff]
      %v1156 = vld [vmem:[%s701 + $0xd9] sm:$0xff]
      %v1157 = vld [vmem:[%s701 + $0xe1] sm:$0xff]
      %v1158 = vld [vmem:[%s701 + $0xf1] sm:$0xff]
      %v1159 = vld [vmem:[%s701 + $0xf9] sm:$0xff]
      %v1160 = vld [vmem:[%s701 + $0x109] sm:$0xff]
      %v1161 = vld [vmem:[%s701 + $0x111] sm:$0xff]
      %v1162 = vld [vmem:[%s701 + $0x121] sm:$0xff]
      %v1163 = vld [vmem:[%s701 + $0x129] sm:$0xff]
      %v1164 = vld [vmem:[%s701 + $0x139] sm:$0xff]
      %v1165 = vld [vmem:[%s701 + $0x141] sm:$0xff]
      %v1166 = vld [vmem:[%s701 + $0x151] sm:$0xff]
      %v1167 = vld [vmem:[%s701 + $0x159] sm:$0xff]
      %v1168 = vld [vmem:[%s701 + $0x169] sm:$0xff]
      %v1169 = vld [vmem:[%s701 + $0x171] sm:$0xff]
      %v1170 = vld [vmem:[%s3 + $0x4] sm:$0x1]
      %v1171 = vlaneseq
      %v1172 = vshrl.u32 %v1171, 7
      %v1173 = vsub.s32 0, %v1172
      %v1174 = vrot.slane %v1170, %v1173
      %v1175 = vmul.f32 %v1138, %v1174
      %v1176 = vmul.f32 %v1139, %v1174
      %v1177 = vmul.f32 %v1140, %v1174
      %v1178 = vmul.f32 %v1141, %v1174
      %v1179 = vmul.f32 %v1142, %v1174
      %v1180 = vmul.f32 %v1143, %v1174
      %v1181 = vmul.f32 %v1144, %v1174
      %v1182 = vmul.f32 %v1145, %v1174
      %v1183 = vmul.f32 %v1146, %v1174
      %v1184 = vmul.f32 %v1147, %v1174
      %v1185 = vmul.f32 %v1148, %v1174
      %v1186 = vmul.f32 %v1149, %v1174
      %v1187 = vmul.f32 %v1150, %v1174
      %v1188 = vmul.f32 %v1151, %v1174
      %v1189 = vmul.f32 %v1152, %v1174
      %v1190 = vmul.f32 %v1153, %v1174
      %v1191 = vmul.f32 %v1154, %v1174
      %v1192 = vmul.f32 %v1155, %v1174
      %v1193 = vmul.f32 %v1156, %v1174
      %v1194 = vmul.f32 %v1157, %v1174
      %v1195 = vmul.f32 %v1158, %v1174
      %v1196 = vmul.f32 %v1159, %v1174
      %v1197 = vmul.f32 %v1160, %v1174
      %v1198 = vmul.f32 %v1161, %v1174
      %v1199 = vmul.f32 %v1162, %v1174
      %v1200 = vmul.f32 %v1163, %v1174
      %v1201 = vmul.f32 %v1164, %v1174
      %v1202 = vmul.f32 %v1165, %v1174
      %v1203 = vmul.f32 %v1166, %v1174
      %v1204 = vmul.f32 %v1167, %v1174
      %v1205 = vmul.f32 %v1168, %v1174
      %v1206 = vmul.f32 %v1169, %v1174
      %v1207 = vadd.f32 %v1106, %v1175
      %v1208 = vadd.f32 %v1107, %v1176
      %v1209 = vadd.f32 %v1108, %v1177
      %v1210 = vadd.f32 %v1109, %v1178
      %v1211 = vadd.f32 %v1110, %v1179
      %v1212 = vadd.f32 %v1111, %v1180
      %v1213 = vadd.f32 %v1112, %v1181
      %v1214 = vadd.f32 %v1113, %v1182
      %v1215 = vadd.f32 %v1114, %v1183
      %v1216 = vadd.f32 %v1115, %v1184
      %v1217 = vadd.f32 %v1116, %v1185
      %v1218 = vadd.f32 %v1117, %v1186
      %v1219 = vadd.f32 %v1118, %v1187
      %v1220 = vadd.f32 %v1119, %v1188
      %v1221 = vadd.f32 %v1120, %v1189
      %v1222 = vadd.f32 %v1121, %v1190
      %v1223 = vadd.f32 %v1122, %v1191
      %v1224 = vadd.f32 %v1123, %v1192
      %v1225 = vadd.f32 %v1124, %v1193
      %v1226 = vadd.f32 %v1125, %v1194
      %v1227 = vadd.f32 %v1126, %v1195
      %v1228 = vadd.f32 %v1127, %v1196
      %v1229 = vadd.f32 %v1128, %v1197
      %v1230 = vadd.f32 %v1129, %v1198
      %v1231 = vadd.f32 %v1130, %v1199
      %v1232 = vadd.f32 %v1131, %v1200
      %v1233 = vadd.f32 %v1132, %v1201
      %v1234 = vadd.f32 %v1133, %v1202
      %v1235 = vadd.f32 %v1134, %v1203
      %v1236 = vadd.f32 %v1135, %v1204
      %v1237 = vadd.f32 %v1136, %v1205
      %v1238 = vadd.f32 %v1137, %v1206
      %v1239 = vld [vmem:[%s701 + $0x2] sm:$0xff]
      %v1240 = vld [vmem:[%s701 + $0xa] sm:$0xff]
      %v1241 = vld [vmem:[%s701 + $0x1a] sm:$0xff]
      %v1242 = vld [vmem:[%s701 + $0x22] sm:$0xff]
      %v1243 = vld [vmem:[%s701 + $0x32] sm:$0xff]
      %v1244 = vld [vmem:[%s701 + $0x3a] sm:$0xff]
      %v1245 = vld [vmem:[%s701 + $0x4a] sm:$0xff]
      %v1246 = vld [vmem:[%s701 + $0x52] sm:$0xff]
      %v1247 = vld [vmem:[%s701 + $0x62] sm:$0xff]
      %v1248 = vld [vmem:[%s701 + $0x6a] sm:$0xff]
      %v1249 = vld [vmem:[%s701 + $0x7a] sm:$0xff]
      %v1250 = vld [vmem:[%s701 + $0x82] sm:$0xff]
      %v1251 = vld [vmem:[%s701 + $0x92] sm:$0xff]
      %v1252 = vld [vmem:[%s701 + $0x9a] sm:$0xff]
      %v1253 = vld [vmem:[%s701 + $0xaa] sm:$0xff]
      %v1254 = vld [vmem:[%s701 + $0xb2] sm:$0xff]
      %v1255 = vld [vmem:[%s701 + $0xc2] sm:$0xff]
      %v1256 = vld [vmem:[%s701 + $0xca] sm:$0xff]
      %v1257 = vld [vmem:[%s701 + $0xda] sm:$0xff]
      %v1258 = vld [vmem:[%s701 + $0xe2] sm:$0xff]
      %v1259 = vld [vmem:[%s701 + $0xf2] sm:$0xff]
      %v1260 = vld [vmem:[%s701 + $0xfa] sm:$0xff]
      %v1261 = vld [vmem:[%s701 + $0x10a] sm:$0xff]
      %v1262 = vld [vmem:[%s701 + $0x112] sm:$0xff]
      %v1263 = vld [vmem:[%s701 + $0x122] sm:$0xff]
      %v1264 = vld [vmem:[%s701 + $0x12a] sm:$0xff]
      %v1265 = vld [vmem:[%s701 + $0x13a] sm:$0xff]
      %v1266 = vld [vmem:[%s701 + $0x142] sm:$0xff]
      %v1267 = vld [vmem:[%s701 + $0x152] sm:$0xff]
      %v1268 = vld [vmem:[%s701 + $0x15a] sm:$0xff]
      %v1269 = vld [vmem:[%s701 + $0x16a] sm:$0xff]
      %v1270 = vld [vmem:[%s701 + $0x172] sm:$0xff]
      %v1271 = vld [vmem:[%s3 + $0x5] sm:$0x1]
      %v1272 = vlaneseq
      %v1273 = vshrl.u32 %v1272, 7
      %v1274 = vsub.s32 0, %v1273
      %v1275 = vrot.slane %v1271, %v1274
      %v1276 = vmul.f32 %v1239, %v1275
      %v1277 = vmul.f32 %v1240, %v1275
      %v1278 = vmul.f32 %v1241, %v1275
      %v1279 = vmul.f32 %v1242, %v1275
      %v1280 = vmul.f32 %v1243, %v1275
      %v1281 = vmul.f32 %v1244, %v1275
      %v1282 = vmul.f32 %v1245, %v1275
      %v1283 = vmul.f32 %v1246, %v1275
      %v1284 = vmul.f32 %v1247, %v1275
      %v1285 = vmul.f32 %v1248, %v1275
      %v1286 = vmul.f32 %v1249, %v1275
      %v1287 = vmul.f32 %v1250, %v1275
      %v1288 = vmul.f32 %v1251, %v1275
      %v1289 = vmul.f32 %v1252, %v1275
      %v1290 = vmul.f32 %v1253, %v1275
      %v1291 = vmul.f32 %v1254, %v1275
      %v1292 = vmul.f32 %v1255, %v1275
      %v1293 = vmul.f32 %v1256, %v1275
      %v1294 = vmul.f32 %v1257, %v1275
      %v1295 = vmul.f32 %v1258, %v1275
      %v1296 = vmul.f32 %v1259, %v1275
      %v1297 = vmul.f32 %v1260, %v1275
      %v1298 = vmul.f32 %v1261, %v1275
      %v1299 = vmul.f32 %v1262, %v1275
      %v1300 = vmul.f32 %v1263, %v1275
      %v1301 = vmul.f32 %v1264, %v1275
      %v1302 = vmul.f32 %v1265, %v1275
      %v1303 = vmul.f32 %v1266, %v1275
      %v1304 = vmul.f32 %v1267, %v1275
      %v1305 = vmul.f32 %v1268, %v1275
      %v1306 = vmul.f32 %v1269, %v1275
      %v1307 = vmul.f32 %v1270, %v1275
      %v1308 = vadd.f32 %v1207, %v1276
      %v1309 = vadd.f32 %v1208, %v1277
      %v1310 = vadd.f32 %v1209, %v1278
      %v1311 = vadd.f32 %v1210, %v1279
      %v1312 = vadd.f32 %v1211, %v1280
      %v1313 = vadd.f32 %v1212, %v1281
      %v1314 = vadd.f32 %v1213, %v1282
      %v1315 = vadd.f32 %v1214, %v1283
      %v1316 = vadd.f32 %v1215, %v1284
      %v1317 = vadd.f32 %v1216, %v1285
      %v1318 = vadd.f32 %v1217, %v1286
      %v1319 = vadd.f32 %v1218, %v1287
      %v1320 = vadd.f32 %v1219, %v1288
      %v1321 = vadd.f32 %v1220, %v1289
      %v1322 = vadd.f32 %v1221, %v1290
      %v1323 = vadd.f32 %v1222, %v1291
      %v1324 = vadd.f32 %v1223, %v1292
      %v1325 = vadd.f32 %v1224, %v1293
      %v1326 = vadd.f32 %v1225, %v1294
      %v1327 = vadd.f32 %v1226, %v1295
      %v1328 = vadd.f32 %v1227, %v1296
      %v1329 = vadd.f32 %v1228, %v1297
      %v1330 = vadd.f32 %v1229, %v1298
      %v1331 = vadd.f32 %v1230, %v1299
      %v1332 = vadd.f32 %v1231, %v1300
      %v1333 = vadd.f32 %v1232, %v1301
      %v1334 = vadd.f32 %v1233, %v1302
      %v1335 = vadd.f32 %v1234, %v1303
      %v1336 = vadd.f32 %v1235, %v1304
      %v1337 = vadd.f32 %v1236, %v1305
      %v1338 = vadd.f32 %v1237, %v1306
      %v1339 = vadd.f32 %v1238, %v1307
      %s1340 = scalar_lea.vmem [#allocation2], 48
      %v1341 = vld [vmem:[%s1340] sm:$0xff]
      %v1342 = vld [vmem:[%s1340 + $0x8] sm:$0xff]
      %v1343 = vld [vmem:[%s1340 + $0x18] sm:$0xff]
      %v1344 = vld [vmem:[%s1340 + $0x20] sm:$0xff]
      %v1345 = vld [vmem:[%s1340 + $0x30] sm:$0xff]
      %v1346 = vld [vmem:[%s1340 + $0x38] sm:$0xff]
      %v1347 = vld [vmem:[%s1340 + $0x48] sm:$0xff]
      %v1348 = vld [vmem:[%s1340 + $0x50] sm:$0xff]
      %v1349 = vld [vmem:[%s1340 + $0x60] sm:$0xff]
      %v1350 = vld [vmem:[%s1340 + $0x68] sm:$0xff]
      %v1351 = vld [vmem:[%s1340 + $0x78] sm:$0xff]
      %v1352 = vld [vmem:[%s1340 + $0x80] sm:$0xff]
      %v1353 = vld [vmem:[%s1340 + $0x90] sm:$0xff]
      %v1354 = vld [vmem:[%s1340 + $0x98] sm:$0xff]
      %v1355 = vld [vmem:[%s1340 + $0xa8] sm:$0xff]
      %v1356 = vld [vmem:[%s1340 + $0xb0] sm:$0xff]
      %v1357 = vld [vmem:[%s1340 + $0xc0] sm:$0xff]
      %v1358 = vld [vmem:[%s1340 + $0xc8] sm:$0xff]
      %v1359 = vld [vmem:[%s1340 + $0xd8] sm:$0xff]
      %v1360 = vld [vmem:[%s1340 + $0xe0] sm:$0xff]
      %v1361 = vld [vmem:[%s1340 + $0xf0] sm:$0xff]
      %v1362 = vld [vmem:[%s1340 + $0xf8] sm:$0xff]
      %v1363 = vld [vmem:[%s1340 + $0x108] sm:$0xff]
      %v1364 = vld [vmem:[%s1340 + $0x110] sm:$0xff]
      %v1365 = vld [vmem:[%s1340 + $0x120] sm:$0xff]
      %v1366 = vld [vmem:[%s1340 + $0x128] sm:$0xff]
      %v1367 = vld [vmem:[%s1340 + $0x138] sm:$0xff]
      %v1368 = vld [vmem:[%s1340 + $0x140] sm:$0xff]
      %v1369 = vld [vmem:[%s1340 + $0x150] sm:$0xff]
      %v1370 = vld [vmem:[%s1340 + $0x158] sm:$0xff]
      %v1371 = vld [vmem:[%s1340 + $0x168] sm:$0xff]
      %v1372 = vld [vmem:[%s1340 + $0x170] sm:$0xff]
      %v1373 = vld [vmem:[%s3 + $0x6] sm:$0x1]
      %v1374 = vlaneseq
      %v1375 = vshrl.u32 %v1374, 7
      %v1376 = vsub.s32 0, %v1375
      %v1377 = vrot.slane %v1373, %v1376
      %v1378 = vmul.f32 %v1341, %v1377
      %v1379 = vmul.f32 %v1342, %v1377
      %v1380 = vmul.f32 %v1343, %v1377
      %v1381 = vmul.f32 %v1344, %v1377
      %v1382 = vmul.f32 %v1345, %v1377
      %v1383 = vmul.f32 %v1346, %v1377
      %v1384 = vmul.f32 %v1347, %v1377
      %v1385 = vmul.f32 %v1348, %v1377
      %v1386 = vmul.f32 %v1349, %v1377
      %v1387 = vmul.f32 %v1350, %v1377
      %v1388 = vmul.f32 %v1351, %v1377
      %v1389 = vmul.f32 %v1352, %v1377
      %v1390 = vmul.f32 %v1353, %v1377
      %v1391 = vmul.f32 %v1354, %v1377
      %v1392 = vmul.f32 %v1355, %v1377
      %v1393 = vmul.f32 %v1356, %v1377
      %v1394 = vmul.f32 %v1357, %v1377
      %v1395 = vmul.f32 %v1358, %v1377
      %v1396 = vmul.f32 %v1359, %v1377
      %v1397 = vmul.f32 %v1360, %v1377
      %v1398 = vmul.f32 %v1361, %v1377
      %v1399 = vmul.f32 %v1362, %v1377
      %v1400 = vmul.f32 %v1363, %v1377
      %v1401 = vmul.f32 %v1364, %v1377
      %v1402 = vmul.f32 %v1365, %v1377
      %v1403 = vmul.f32 %v1366, %v1377
      %v1404 = vmul.f32 %v1367, %v1377
      %v1405 = vmul.f32 %v1368, %v1377
      %v1406 = vmul.f32 %v1369, %v1377
      %v1407 = vmul.f32 %v1370, %v1377
      %v1408 = vmul.f32 %v1371, %v1377
      %v1409 = vmul.f32 %v1372, %v1377
      %v1410 = vadd.f32 %v1308, %v1378
      %v1411 = vadd.f32 %v1309, %v1379
      %v1412 = vadd.f32 %v1310, %v1380
      %v1413 = vadd.f32 %v1311, %v1381
      %v1414 = vadd.f32 %v1312, %v1382
      %v1415 = vadd.f32 %v1313, %v1383
      %v1416 = vadd.f32 %v1314, %v1384
      %v1417 = vadd.f32 %v1315, %v1385
      %v1418 = vadd.f32 %v1316, %v1386
      %v1419 = vadd.f32 %v1317, %v1387
      %v1420 = vadd.f32 %v1318, %v1388
      %v1421 = vadd.f32 %v1319, %v1389
      %v1422 = vadd.f32 %v1320, %v1390
      %v1423 = vadd.f32 %v1321, %v1391
      %v1424 = vadd.f32 %v1322, %v1392
      %v1425 = vadd.f32 %v1323, %v1393
      %v1426 = vadd.f32 %v1324, %v1394
      %v1427 = vadd.f32 %v1325, %v1395
      %v1428 = vadd.f32 %v1326, %v1396
      %v1429 = vadd.f32 %v1327, %v1397
      %v1430 = vadd.f32 %v1328, %v1398
      %v1431 = vadd.f32 %v1329, %v1399
      %v1432 = vadd.f32 %v1330, %v1400
      %v1433 = vadd.f32 %v1331, %v1401
      %v1434 = vadd.f32 %v1332, %v1402
      %v1435 = vadd.f32 %v1333, %v1403
      %v1436 = vadd.f32 %v1334, %v1404
      %v1437 = vadd.f32 %v1335, %v1405
      %v1438 = vadd.f32 %v1336, %v1406
      %v1439 = vadd.f32 %v1337, %v1407
      %v1440 = vadd.f32 %v1338, %v1408
      %v1441 = vadd.f32 %v1339, %v1409
      %v1442 = vld [vmem:[%s1340 + $0x1] sm:$0xff]
      %v1443 = vld [vmem:[%s1340 + $0x9] sm:$0xff]
      %v1444 = vld [vmem:[%s1340 + $0x19] sm:$0xff]
      %v1445 = vld [vmem:[%s1340 + $0x21] sm:$0xff]
      %v1446 = vld [vmem:[%s1340 + $0x31] sm:$0xff]
      %v1447 = vld [vmem:[%s1340 + $0x39] sm:$0xff]
      %v1448 = vld [vmem:[%s1340 + $0x49] sm:$0xff]
      %v1449 = vld [vmem:[%s1340 + $0x51] sm:$0xff]
      %v1450 = vld [vmem:[%s1340 + $0x61] sm:$0xff]
      %v1451 = vld [vmem:[%s1340 + $0x69] sm:$0xff]
      %v1452 = vld [vmem:[%s1340 + $0x79] sm:$0xff]
      %v1453 = vld [vmem:[%s1340 + $0x81] sm:$0xff]
      %v1454 = vld [vmem:[%s1340 + $0x91] sm:$0xff]
      %v1455 = vld [vmem:[%s1340 + $0x99] sm:$0xff]
      %v1456 = vld [vmem:[%s1340 + $0xa9] sm:$0xff]
      %v1457 = vld [vmem:[%s1340 + $0xb1] sm:$0xff]
      %v1458 = vld [vmem:[%s1340 + $0xc1] sm:$0xff]
      %v1459 = vld [vmem:[%s1340 + $0xc9] sm:$0xff]
      %v1460 = vld [vmem:[%s1340 + $0xd9] sm:$0xff]
      %v1461 = vld [vmem:[%s1340 + $0xe1] sm:$0xff]
      %v1462 = vld [vmem:[%s1340 + $0xf1] sm:$0xff]
      %v1463 = vld [vmem:[%s1340 + $0xf9] sm:$0xff]
      %v1464 = vld [vmem:[%s1340 + $0x109] sm:$0xff]
      %v1465 = vld [vmem:[%s1340 + $0x111] sm:$0xff]
      %v1466 = vld [vmem:[%s1340 + $0x121] sm:$0xff]
      %v1467 = vld [vmem:[%s1340 + $0x129] sm:$0xff]
      %v1468 = vld [vmem:[%s1340 + $0x139] sm:$0xff]
      %v1469 = vld [vmem:[%s1340 + $0x141] sm:$0xff]
      %v1470 = vld [vmem:[%s1340 + $0x151] sm:$0xff]
      %v1471 = vld [vmem:[%s1340 + $0x159] sm:$0xff]
      %v1472 = vld [vmem:[%s1340 + $0x169] sm:$0xff]
      %v1473 = vld [vmem:[%s1340 + $0x171] sm:$0xff]
      %v1474 = vld [vmem:[%s3 + $0x7] sm:$0x1]
      %v1475 = vlaneseq
      %v1476 = vshrl.u32 %v1475, 7
      %v1477 = vsub.s32 0, %v1476
      %v1478 = vrot.slane %v1474, %v1477
      %v1479 = vmul.f32 %v1442, %v1478
      %v1480 = vmul.f32 %v1443, %v1478
      %v1481 = vmul.f32 %v1444, %v1478
      %v1482 = vmul.f32 %v1445, %v1478
      %v1483 = vmul.f32 %v1446, %v1478
      %v1484 = vmul.f32 %v1447, %v1478
      %v1485 = vmul.f32 %v1448, %v1478
      %v1486 = vmul.f32 %v1449, %v1478
      %v1487 = vmul.f32 %v1450, %v1478
      %v1488 = vmul.f32 %v1451, %v1478
      %v1489 = vmul.f32 %v1452, %v1478
      %v1490 = vmul.f32 %v1453, %v1478
      %v1491 = vmul.f32 %v1454, %v1478
      %v1492 = vmul.f32 %v1455, %v1478
      %v1493 = vmul.f32 %v1456, %v1478
      %v1494 = vmul.f32 %v1457, %v1478
      %v1495 = vmul.f32 %v1458, %v1478
      %v1496 = vmul.f32 %v1459, %v1478
      %v1497 = vmul.f32 %v1460, %v1478
      %v1498 = vmul.f32 %v1461, %v1478
      %v1499 = vmul.f32 %v1462, %v1478
      %v1500 = vmul.f32 %v1463, %v1478
      %v1501 = vmul.f32 %v1464, %v1478
      %v1502 = vmul.f32 %v1465, %v1478
      %v1503 = vmul.f32 %v1466, %v1478
      %v1504 = vmul.f32 %v1467, %v1478
      %v1505 = vmul.f32 %v1468, %v1478
      %v1506 = vmul.f32 %v1469, %v1478
      %v1507 = vmul.f32 %v1470, %v1478
      %v1508 = vmul.f32 %v1471, %v1478
      %v1509 = vmul.f32 %v1472, %v1478
      %v1510 = vmul.f32 %v1473, %v1478
      %v1511 = vadd.f32 %v1410, %v1479
      %v1512 = vadd.f32 %v1411, %v1480
      %v1513 = vadd.f32 %v1412, %v1481
      %v1514 = vadd.f32 %v1413, %v1482
      %v1515 = vadd.f32 %v1414, %v1483
      %v1516 = vadd.f32 %v1415, %v1484
      %v1517 = vadd.f32 %v1416, %v1485
      %v1518 = vadd.f32 %v1417, %v1486
      %v1519 = vadd.f32 %v1418, %v1487
      %v1520 = vadd.f32 %v1419, %v1488
      %v1521 = vadd.f32 %v1420, %v1489
      %v1522 = vadd.f32 %v1421, %v1490
      %v1523 = vadd.f32 %v1422, %v1491
      %v1524 = vadd.f32 %v1423, %v1492
      %v1525 = vadd.f32 %v1424, %v1493
      %v1526 = vadd.f32 %v1425, %v1494
      %v1527 = vadd.f32 %v1426, %v1495
      %v1528 = vadd.f32 %v1427, %v1496
      %v1529 = vadd.f32 %v1428, %v1497
      %v1530 = vadd.f32 %v1429, %v1498
      %v1531 = vadd.f32 %v1430, %v1499
      %v1532 = vadd.f32 %v1431, %v1500
      %v1533 = vadd.f32 %v1432, %v1501
      %v1534 = vadd.f32 %v1433, %v1502
      %v1535 = vadd.f32 %v1434, %v1503
      %v1536 = vadd.f32 %v1435, %v1504
      %v1537 = vadd.f32 %v1436, %v1505
      %v1538 = vadd.f32 %v1437, %v1506
      %v1539 = vadd.f32 %v1438, %v1507
      %v1540 = vadd.f32 %v1439, %v1508
      %v1541 = vadd.f32 %v1440, %v1509
      %v1542 = vadd.f32 %v1441, %v1510
      %v1543 = vld [vmem:[%s1340 + $0x2] sm:$0xff]
      %v1544 = vld [vmem:[%s1340 + $0xa] sm:$0xff]
      %v1545 = vld [vmem:[%s1340 + $0x1a] sm:$0xff]
      %v1546 = vld [vmem:[%s1340 + $0x22] sm:$0xff]
      %v1547 = vld [vmem:[%s1340 + $0x32] sm:$0xff]
      %v1548 = vld [vmem:[%s1340 + $0x3a] sm:$0xff]
      %v1549 = vld [vmem:[%s1340 + $0x4a] sm:$0xff]
      %v1550 = vld [vmem:[%s1340 + $0x52] sm:$0xff]
      %v1551 = vld [vmem:[%s1340 + $0x62] sm:$0xff]
      %v1552 = vld [vmem:[%s1340 + $0x6a] sm:$0xff]
      %v1553 = vld [vmem:[%s1340 + $0x7a] sm:$0xff]
      %v1554 = vld [vmem:[%s1340 + $0x82] sm:$0xff]
      %v1555 = vld [vmem:[%s1340 + $0x92] sm:$0xff]
      %v1556 = vld [vmem:[%s1340 + $0x9a] sm:$0xff]
      %v1557 = vld [vmem:[%s1340 + $0xaa] sm:$0xff]
      %v1558 = vld [vmem:[%s1340 + $0xb2] sm:$0xff]
      %v1559 = vld [vmem:[%s1340 + $0xc2] sm:$0xff]
      %v1560 = vld [vmem:[%s1340 + $0xca] sm:$0xff]
      %v1561 = vld [vmem:[%s1340 + $0xda] sm:$0xff]
      %v1562 = vld [vmem:[%s1340 + $0xe2] sm:$0xff]
      %v1563 = vld [vmem:[%s1340 + $0xf2] sm:$0xff]
      %v1564 = vld [vmem:[%s1340 + $0xfa] sm:$0xff]
      %v1565 = vld [vmem:[%s1340 + $0x10a] sm:$0xff]
      %v1566 = vld [vmem:[%s1340 + $0x112] sm:$0xff]
      %v1567 = vld [vmem:[%s1340 + $0x122] sm:$0xff]
      %v1568 = vld [vmem:[%s1340 + $0x12a] sm:$0xff]
      %v1569 = vld [vmem:[%s1340 + $0x13a] sm:$0xff]
      %v1570 = vld [vmem:[%s1340 + $0x142] sm:$0xff]
      %v1571 = vld [vmem:[%s1340 + $0x152] sm:$0xff]
      %v1572 = vld [vmem:[%s1340 + $0x15a] sm:$0xff]
      %v1573 = vld [vmem:[%s1340 + $0x16a] sm:$0xff]
      %v1574 = vld [vmem:[%s1340 + $0x172] sm:$0xff]
      %v1575 = vld [vmem:[%s3 + $0x8] sm:$0x1]
      %v1576 = vlaneseq
      %v1577 = vshrl.u32 %v1576, 7
      %v1578 = vsub.s32 0, %v1577
      %v1579 = vrot.slane %v1575, %v1578
      %v1580 = vmul.f32 %v1543, %v1579
      %v1581 = vmul.f32 %v1544, %v1579
      %v1582 = vmul.f32 %v1545, %v1579
      %v1583 = vmul.f32 %v1546, %v1579
      %v1584 = vmul.f32 %v1547, %v1579
      %v1585 = vmul.f32 %v1548, %v1579
      %v1586 = vmul.f32 %v1549, %v1579
      %v1587 = vmul.f32 %v1550, %v1579
      %v1588 = vmul.f32 %v1551, %v1579
      %v1589 = vmul.f32 %v1552, %v1579
      %v1590 = vmul.f32 %v1553, %v1579
      %v1591 = vmul.f32 %v1554, %v1579
      %v1592 = vmul.f32 %v1555, %v1579
      %v1593 = vmul.f32 %v1556, %v1579
      %v1594 = vmul.f32 %v1557, %v1579
      %v1595 = vmul.f32 %v1558, %v1579
      %v1596 = vmul.f32 %v1559, %v1579
      %v1597 = vmul.f32 %v1560, %v1579
      %v1598 = vmul.f32 %v1561, %v1579
      %v1599 = vmul.f32 %v1562, %v1579
      %v1600 = vmul.f32 %v1563, %v1579
      %v1601 = vmul.f32 %v1564, %v1579
      %v1602 = vmul.f32 %v1565, %v1579
      %v1603 = vmul.f32 %v1566, %v1579
      %v1604 = vmul.f32 %v1567, %v1579
      %v1605 = vmul.f32 %v1568, %v1579
      %v1606 = vmul.f32 %v1569, %v1579
      %v1607 = vmul.f32 %v1570, %v1579
      %v1608 = vmul.f32 %v1571, %v1579
      %v1609 = vmul.f32 %v1572, %v1579
      %v1610 = vmul.f32 %v1573, %v1579
      %v1611 = vmul.f32 %v1574, %v1579
      %v1612 = vadd.f32 %v1511, %v1580
      %v1613 = vadd.f32 %v1512, %v1581
      %v1614 = vadd.f32 %v1513, %v1582
      %v1615 = vadd.f32 %v1514, %v1583
      %v1616 = vadd.f32 %v1515, %v1584
      %v1617 = vadd.f32 %v1516, %v1585
      %v1618 = vadd.f32 %v1517, %v1586
      %v1619 = vadd.f32 %v1518, %v1587
      %v1620 = vadd.f32 %v1519, %v1588
      %v1621 = vadd.f32 %v1520, %v1589
      %v1622 = vadd.f32 %v1521, %v1590
      %v1623 = vadd.f32 %v1522, %v1591
      %v1624 = vadd.f32 %v1523, %v1592
      %v1625 = vadd.f32 %v1524, %v1593
      %v1626 = vadd.f32 %v1525, %v1594
      %v1627 = vadd.f32 %v1526, %v1595
      %v1628 = vadd.f32 %v1527, %v1596
      %v1629 = vadd.f32 %v1528, %v1597
      %v1630 = vadd.f32 %v1529, %v1598
      %v1631 = vadd.f32 %v1530, %v1599
      %v1632 = vadd.f32 %v1531, %v1600
      %v1633 = vadd.f32 %v1532, %v1601
      %v1634 = vadd.f32 %v1533, %v1602
      %v1635 = vadd.f32 %v1534, %v1603
      %v1636 = vadd.f32 %v1535, %v1604
      %v1637 = vadd.f32 %v1536, %v1605
      %v1638 = vadd.f32 %v1537, %v1606
      %v1639 = vadd.f32 %v1538, %v1607
      %v1640 = vadd.f32 %v1539, %v1608
      %v1641 = vadd.f32 %v1540, %v1609
      %v1642 = vadd.f32 %v1541, %v1610
      %v1643 = vadd.f32 %v1542, %v1611
      %v1644 = vld [vmem:[%s4] sm:$0x1]
      %v1646 = vlaneseq
      %v1647 = vshrl.u32 %v1646, 7
      %v1648 = vsub.s32 0, %v1647
      %v1649 = vrot.slane %v1644, %v1648
      %v1651 = vadd.f32 %v1612, %v1649
      %v1652 = vadd.f32 %v1613, %v1649
      %v1653 = vadd.f32 %v1614, %v1649
      %v1654 = vadd.f32 %v1615, %v1649
      %v1655 = vadd.f32 %v1616, %v1649
      %v1656 = vadd.f32 %v1617, %v1649
      %v1657 = vadd.f32 %v1618, %v1649
      %v1658 = vadd.f32 %v1619, %v1649
      %v1659 = vadd.f32 %v1620, %v1649
      %v1660 = vadd.f32 %v1621, %v1649
      %v1661 = vadd.f32 %v1622, %v1649
      %v1662 = vadd.f32 %v1623, %v1649
      %v1663 = vadd.f32 %v1624, %v1649
      %v1664 = vadd.f32 %v1625, %v1649
      %v1665 = vadd.f32 %v1626, %v1649
      %v1666 = vadd.f32 %v1627, %v1649
      %v1667 = vadd.f32 %v1628, %v1649
      %v1668 = vadd.f32 %v1629, %v1649
      %v1669 = vadd.f32 %v1630, %v1649
      %v1670 = vadd.f32 %v1631, %v1649
      %v1671 = vadd.f32 %v1632, %v1649
      %v1672 = vadd.f32 %v1633, %v1649
      %v1673 = vadd.f32 %v1634, %v1649
      %v1674 = vadd.f32 %v1635, %v1649
      %v1675 = vadd.f32 %v1636, %v1649
      %v1676 = vadd.f32 %v1637, %v1649
      %v1677 = vadd.f32 %v1638, %v1649
      %v1678 = vadd.f32 %v1639, %v1649
      %v1679 = vadd.f32 %v1640, %v1649
      %v1680 = vadd.f32 %v1641, %v1649
      %v1681 = vadd.f32 %v1642, %v1649
      %v1682 = vadd.f32 %v1643, %v1649
      %v1683 = vpack.c.bf16 %v1652, %v1651
      %v1684 = vpack.c.bf16 %v1654, %v1653
      %v1685 = vpack.c.bf16 %v1656, %v1655
      %v1686 = vpack.c.bf16 %v1658, %v1657
      %v1687 = vpack.c.bf16 %v1660, %v1659
      %v1688 = vpack.c.bf16 %v1662, %v1661
      %v1689 = vpack.c.bf16 %v1664, %v1663
      %v1690 = vpack.c.bf16 %v1666, %v1665
      %v1691 = vpack.c.bf16 %v1668, %v1667
      %v1692 = vpack.c.bf16 %v1670, %v1669
      %v1693 = vpack.c.bf16 %v1672, %v1671
      %v1694 = vpack.c.bf16 %v1674, %v1673
      %v1695 = vpack.c.bf16 %v1676, %v1675
      %v1696 = vpack.c.bf16 %v1678, %v1677
      %v1697 = vpack.c.bf16 %v1680, %v1679
      %v1698 = vpack.c.bf16 %v1682, %v1681
      %v1699 = vld [vmem:[%s5] sm:$0xf]
      %v1700 = vld [vmem:[%s6] sm:$0x1]
      %v1702 = vlaneseq
      %v1703 = vshrl.u32 %v1702, 7
      %v1704 = vsub.s32 0, %v1703
      %v1705 = vrot.slane %v1700, %v1704
      %v1708 = vsel %vm400, %v1683, 0
      %v1711 = vsel %vm400, %v1684, 0
      %v1714 = vsel %vm400, %v1685, 0
      %v1717 = vsel %vm400, %v1686, 0
      %v1720 = vsel %vm400, %v1687, 0
      %v1723 = vsel %vm400, %v1688, 0
      %v1726 = vsel %vm400, %v1689, 0
      %v1729 = vsel %vm400, %v1690, 0
      %v1732 = vsel %vm400, %v1691, 0
      %v1735 = vsel %vm400, %v1692, 0
      %v1738 = vsel %vm400, %v1693, 0
      %v1741 = vsel %vm400, %v1694, 0
      %v1744 = vsel %vm400, %v1695, 0
      %v1747 = vsel %vm400, %v1696, 0
      %v1750 = vsel %vm400, %v1697, 0
      %v1753 = vsel %vm400, %v1698, 0
      %v1756 = vsel %vm449, %v1699, 0
      %1758 = vmatprep.subr.bf16.mxu0 0
      %1759 = vmatpush1.bf16.msra.mxu0 %v1756
      %1760 = vmatprep.subr.bf16.mxu0 0
      %1761 = vmatpush1.bf16.msra.mxu0 0
      %1762 = vmatprep.subr.bf16.mxu0 0
      %1763 = vmatpush1.bf16.msra.mxu0 0
      %1764 = vmatprep.subr.bf16.mxu0 0
      %1765 = vmatpush1.bf16.msra.mxu0 0
      %1766 = vmatprep.subr.bf16.mxu0 0
      %1767 = vmatpush1.bf16.msra.mxu0 0
      %1768 = vmatprep.subr.bf16.mxu0 0
      %1769 = vmatpush1.bf16.msra.mxu0 0
      %1770 = vmatprep.subr.bf16.mxu0 0
      %1771 = vmatpush1.bf16.msra.mxu0 0
      %1772 = vmatprep.subr.bf16.mxu0 0
      %1773 = vmatpush1.bf16.msra.mxu0 0
      %1774 = vmatprep.subr.bf16.mxu0 0
      %1775 = vmatpush1.bf16.msra.mxu0 0
      %1776 = vmatprep.subr.bf16.mxu0 0
      %1777 = vmatpush1.bf16.msra.mxu0 0
      %1778 = vmatprep.subr.bf16.mxu0 0
      %1779 = vmatpush1.bf16.msra.mxu0 0
      %1780 = vmatprep.subr.bf16.mxu0 0
      %1781 = vmatpush1.bf16.msra.mxu0 0
      %1782 = vmatprep.subr.bf16.mxu0 0
      %1783 = vmatpush1.bf16.msra.mxu0 0
      %1784 = vmatprep.subr.bf16.mxu0 0
      %1785 = vmatpush1.bf16.msra.mxu0 0
      %1786 = vmatprep.subr.bf16.mxu0 0
      %1787 = vmatpush1.bf16.msra.mxu0 0
      %1788 = vmatprep.subr.bf16.mxu0 0
      %1789 = vmatpush1.bf16.msra.mxu0 0
      %1790 = vmatprep.mubr.bf16.mxu0 0
      %1791 = vmatmul.mubr.bf16.gmra.mrb[0].mxu0 %v1708
      %v1792 = vpop.f32.mrb[0].mxu0
      %v1793 = vadd.f32 %v1705, %v1792
      %v1794 = vpop.f32.mrb[0].mxu0
      %v1795 = vpop.f32.mrb[0].mxu0
      %v1796 = vadd.f32 %v1705, %v1795
      %v1797 = vpop.f32.mrb[0].mxu0
      %1798 = vmatprep.mubr.bf16.mxu0 0
      %1799 = vmatmul.mubr.bf16.gmra.mrb[0].mxu0 %v1711
      %v1800 = vpop.f32.mrb[0].mxu0
      %v1801 = vadd.f32 %v1705, %v1800
      %v1802 = vpop.f32.mrb[0].mxu0
      %v1803 = vpop.f32.mrb[0].mxu0
      %v1804 = vadd.f32 %v1705, %v1803
      %v1805 = vpop.f32.mrb[0].mxu0
      %1806 = vmatprep.mubr.bf16.mxu0 0
      %1807 = vmatmul.mubr.bf16.gmra.mrb[0].mxu0 %v1714
      %v1808 = vpop.f32.mrb[0].mxu0
      %v1809 = vadd.f32 %v1705, %v1808
      %v1810 = vpop.f32.mrb[0].mxu0
      %v1811 = vpop.f32.mrb[0].mxu0
      %v1812 = vadd.f32 %v1705, %v1811
      %v1813 = vpop.f32.mrb[0].mxu0
      %1814 = vmatprep.mubr.bf16.mxu0 0
      %1815 = vmatmul.mubr.bf16.gmra.mrb[0].mxu0 %v1717
      %v1816 = vpop.f32.mrb[0].mxu0
      %v1817 = vadd.f32 %v1705, %v1816
      %v1818 = vpop.f32.mrb[0].mxu0
      %v1819 = vpop.f32.mrb[0].mxu0
      %v1820 = vadd.f32 %v1705, %v1819
      %v1821 = vpop.f32.mrb[0].mxu0
      %1822 = vmatprep.mubr.bf16.mxu0 0
      %1823 = vmatmul.mubr.bf16.gmra.mrb[0].mxu0 %v1720
      %v1824 = vpop.f32.mrb[0].mxu0
      %v1825 = vadd.f32 %v1705, %v1824
      %v1826 = vpop.f32.mrb[0].mxu0
      %v1827 = vpop.f32.mrb[0].mxu0
      %v1828 = vadd.f32 %v1705, %v1827
      %v1829 = vpop.f32.mrb[0].mxu0
      %1830 = vmatprep.mubr.bf16.mxu0 0
      %1831 = vmatmul.mubr.bf16.gmra.mrb[0].mxu0 %v1723
      %v1832 = vpop.f32.mrb[0].mxu0
      %v1833 = vadd.f32 %v1705, %v1832
      %v1834 = vpop.f32.mrb[0].mxu0
      %v1835 = vpop.f32.mrb[0].mxu0
      %v1836 = vadd.f32 %v1705, %v1835
      %v1837 = vpop.f32.mrb[0].mxu0
      %1838 = vmatprep.mubr.bf16.mxu0 0
      %1839 = vmatmul.mubr.bf16.gmra.mrb[0].mxu0 %v1726
      %v1840 = vpop.f32.mrb[0].mxu0
      %v1841 = vadd.f32 %v1705, %v1840
      %v1842 = vpop.f32.mrb[0].mxu0
      %v1843 = vpop.f32.mrb[0].mxu0
      %v1844 = vadd.f32 %v1705, %v1843
      %v1845 = vpop.f32.mrb[0].mxu0
      %1846 = vmatprep.mubr.bf16.mxu0 0
      %1847 = vmatmul.mubr.bf16.gmra.mrb[0].mxu0 %v1729
      %v1848 = vpop.f32.mrb[0].mxu0
      %v1849 = vadd.f32 %v1705, %v1848
      %v1850 = vpop.f32.mrb[0].mxu0
      %v1851 = vpop.f32.mrb[0].mxu0
      %v1852 = vadd.f32 %v1705, %v1851
      %v1853 = vpop.f32.mrb[0].mxu0
      %1854 = vmatprep.mubr.bf16.mxu0 0
      %1855 = vmatmul.mubr.bf16.gmra.mrb[0].mxu0 %v1732
      %v1856 = vpop.f32.mrb[0].mxu0
      %v1857 = vadd.f32 %v1705, %v1856
      %v1858 = vpop.f32.mrb[0].mxu0
      %v1859 = vpop.f32.mrb[0].mxu0
      %v1860 = vadd.f32 %v1705, %v1859
      %v1861 = vpop.f32.mrb[0].mxu0
      %1862 = vmatprep.mubr.bf16.mxu0 0
      %1863 = vmatmul.mubr.bf16.gmra.mrb[0].mxu0 %v1735
      %v1864 = vpop.f32.mrb[0].mxu0
      %v1865 = vadd.f32 %v1705, %v1864
      %v1866 = vpop.f32.mrb[0].mxu0
      %v1867 = vpop.f32.mrb[0].mxu0
      %v1868 = vadd.f32 %v1705, %v1867
      %v1869 = vpop.f32.mrb[0].mxu0
      %1870 = vmatprep.mubr.bf16.mxu0 0
      %1871 = vmatmul.mubr.bf16.gmra.mrb[0].mxu0 %v1738
      %v1872 = vpop.f32.mrb[0].mxu0
      %v1873 = vadd.f32 %v1705, %v1872
      %v1874 = vpop.f32.mrb[0].mxu0
      %v1875 = vpop.f32.mrb[0].mxu0
      %v1876 = vadd.f32 %v1705, %v1875
      %v1877 = vpop.f32.mrb[0].mxu0
      %1878 = vmatprep.mubr.bf16.mxu0 0
      %1879 = vmatmul.mubr.bf16.gmra.mrb[0].mxu0 %v1741
      %v1880 = vpop.f32.mrb[0].mxu0
      %v1881 = vadd.f32 %v1705, %v1880
      %v1882 = vpop.f32.mrb[0].mxu0
      %v1883 = vpop.f32.mrb[0].mxu0
      %v1884 = vadd.f32 %v1705, %v1883
      %v1885 = vpop.f32.mrb[0].mxu0
      %1886 = vmatprep.mubr.bf16.mxu0 0
      %1887 = vmatmul.mubr.bf16.gmra.mrb[0].mxu0 %v1744
      %v1888 = vpop.f32.mrb[0].mxu0
      %v1889 = vadd.f32 %v1705, %v1888
      %v1890 = vpop.f32.mrb[0].mxu0
      %v1891 = vpop.f32.mrb[0].mxu0
      %v1892 = vadd.f32 %v1705, %v1891
      %v1893 = vpop.f32.mrb[0].mxu0
      %1894 = vmatprep.mubr.bf16.mxu0 0
      %1895 = vmatmul.mubr.bf16.gmra.mrb[0].mxu0 %v1747
      %v1896 = vpop.f32.mrb[0].mxu0
      %v1897 = vadd.f32 %v1705, %v1896
      %v1898 = vpop.f32.mrb[0].mxu0
      %v1899 = vpop.f32.mrb[0].mxu0
      %v1900 = vadd.f32 %v1705, %v1899
      %v1901 = vpop.f32.mrb[0].mxu0
      %1902 = vmatprep.mubr.bf16.mxu0 0
      %1903 = vmatmul.mubr.bf16.gmra.mrb[0].mxu0 %v1750
      %v1904 = vpop.f32.mrb[0].mxu0
      %v1905 = vadd.f32 %v1705, %v1904
      %v1906 = vpop.f32.mrb[0].mxu0
      %v1907 = vpop.f32.mrb[0].mxu0
      %v1908 = vadd.f32 %v1705, %v1907
      %v1909 = vpop.f32.mrb[0].mxu0
      %1910 = vmatprep.mubr.bf16.mxu0 0
      %1911 = vmatmul.mubr.bf16.gmra.mrb[0].mxu0 %v1753
      %v1912 = vpop.f32.mrb[0].mxu0
      %v1913 = vadd.f32 %v1705, %v1912
      %v1914 = vpop.f32.mrb[0].mxu0
      %v1915 = vpop.f32.mrb[0].mxu0
      %v1916 = vadd.f32 %v1705, %v1915
      %v1917 = vpop.f32.mrb[0].mxu0
      %1918 = vdwg.mxu0
      %v1919 = vunpack.c.l.bf16 %v280
      %v1920 = vunpack.c.l.bf16 %v281
      %v1921 = vunpack.c.l.bf16 %v282
      %v1922 = vunpack.c.l.bf16 %v283
      %v1923 = vunpack.c.l.bf16 %v284
      %v1924 = vunpack.c.l.bf16 %v285
      %v1925 = vunpack.c.l.bf16 %v286
      %v1926 = vunpack.c.l.bf16 %v287
      %v1927 = vunpack.c.l.bf16 %v288
      %v1928 = vunpack.c.l.bf16 %v289
      %v1929 = vunpack.c.l.bf16 %v290
      %v1930 = vunpack.c.l.bf16 %v291
      %v1931 = vunpack.c.l.bf16 %v292
      %v1932 = vunpack.c.l.bf16 %v293
      %v1933 = vunpack.c.l.bf16 %v294
      %v1934 = vunpack.c.l.bf16 %v295
      %v1935 = vunpack.c.l.bf16 %v296
      %v1936 = vunpack.c.l.bf16 %v297
      %v1937 = vunpack.c.l.bf16 %v298
      %v1938 = vunpack.c.l.bf16 %v299
      %v1939 = vunpack.c.l.bf16 %v300
      %v1940 = vunpack.c.l.bf16 %v301
      %v1941 = vunpack.c.l.bf16 %v302
      %v1942 = vunpack.c.l.bf16 %v303
      %v1943 = vunpack.c.l.bf16 %v304
      %v1944 = vunpack.c.l.bf16 %v305
      %v1945 = vunpack.c.l.bf16 %v306
      %v1946 = vunpack.c.l.bf16 %v307
      %v1947 = vunpack.c.l.bf16 %v308
      %v1948 = vunpack.c.l.bf16 %v309
      %v1949 = vunpack.c.l.bf16 %v310
      %v1950 = vunpack.c.l.bf16 %v311
      %v1951 = vadd.f32 %v1793, %v1919
      %v1952 = vadd.f32 %v1796, %v1920
      %v1953 = vadd.f32 %v1801, %v1921
      %v1954 = vadd.f32 %v1804, %v1922
      %v1955 = vadd.f32 %v1809, %v1923
      %v1956 = vadd.f32 %v1812, %v1924
      %v1957 = vadd.f32 %v1817, %v1925
      %v1958 = vadd.f32 %v1820, %v1926
      %v1959 = vadd.f32 %v1825, %v1927
      %v1960 = vadd.f32 %v1828, %v1928
      %v1961 = vadd.f32 %v1833, %v1929
      %v1962 = vadd.f32 %v1836, %v1930
      %v1963 = vadd.f32 %v1841, %v1931
      %v1964 = vadd.f32 %v1844, %v1932
      %v1965 = vadd.f32 %v1849, %v1933
      %v1966 = vadd.f32 %v1852, %v1934
      %v1967 = vadd.f32 %v1857, %v1935
      %v1968 = vadd.f32 %v1860, %v1936
      %v1969 = vadd.f32 %v1865, %v1937
      %v1970 = vadd.f32 %v1868, %v1938
      %v1971 = vadd.f32 %v1873, %v1939
      %v1972 = vadd.f32 %v1876, %v1940
      %v1973 = vadd.f32 %v1881, %v1941
      %v1974 = vadd.f32 %v1884, %v1942
      %v1975 = vadd.f32 %v1889, %v1943
      %v1976 = vadd.f32 %v1892, %v1944
      %v1977 = vadd.f32 %v1897, %v1945
      %v1978 = vadd.f32 %v1900, %v1946
      %v1979 = vadd.f32 %v1905, %v1947
      %v1980 = vadd.f32 %v1908, %v1948
      %v1981 = vadd.f32 %v1913, %v1949
      %v1982 = vadd.f32 %v1916, %v1950
      %v1983 = vmax.f32 %v1951, 0.0
      %v1984 = vmax.f32 %v1952, 0.0
      %v1985 = vmax.f32 %v1953, 0.0
      %v1986 = vmax.f32 %v1954, 0.0
      %v1987 = vmax.f32 %v1955, 0.0
      %v1988 = vmax.f32 %v1956, 0.0
      %v1989 = vmax.f32 %v1957, 0.0
      %v1990 = vmax.f32 %v1958, 0.0
      %v1991 = vmax.f32 %v1959, 0.0
      %v1992 = vmax.f32 %v1960, 0.0
      %v1993 = vmax.f32 %v1961, 0.0
      %v1994 = vmax.f32 %v1962, 0.0
      %v1995 = vmax.f32 %v1963, 0.0
      %v1996 = vmax.f32 %v1964, 0.0
      %v1997 = vmax.f32 %v1965, 0.0
      %v1998 = vmax.f32 %v1966, 0.0
      %v1999 = vmax.f32 %v1967, 0.0
      %v2000 = vmax.f32 %v1968, 0.0
      %v2001 = vmax.f32 %v1969, 0.0
      %v2002 = vmax.f32 %v1970, 0.0
      %v2003 = vmax.f32 %v1971, 0.0
      %v2004 = vmax.f32 %v1972, 0.0
      %v2005 = vmax.f32 %v1973, 0.0
      %v2006 = vmax.f32 %v1974, 0.0
      %v2007 = vmax.f32 %v1975, 0.0
      %v2008 = vmax.f32 %v1976, 0.0
      %v2009 = vmax.f32 %v1977, 0.0
      %v2010 = vmax.f32 %v1978, 0.0
      %v2011 = vmax.f32 %v1979, 0.0
      %v2012 = vmax.f32 %v1980, 0.0
      %v2013 = vmax.f32 %v1981, 0.0
      %v2014 = vmax.f32 %v1982, 0.0
      %2015 = vst.msk [vmem:[%s278] sm:$0xff] %vm400, %v1983
      %2016 = vst.msk [vmem:[%s278 + $0x8] sm:$0xff] %vm400, %v1984
      %2017 = vst.msk [vmem:[%s278 + $0x10] sm:$0xff] %vm400, %v1985
      %2018 = vst.msk [vmem:[%s278 + $0x18] sm:$0xff] %vm400, %v1986
      %2019 = vst.msk [vmem:[%s278 + $0x20] sm:$0xff] %vm400, %v1987
      %2020 = vst.msk [vmem:[%s278 + $0x28] sm:$0xff] %vm400, %v1988
      %2021 = vst.msk [vmem:[%s278 + $0x30] sm:$0xff] %vm400, %v1989
      %2022 = vst.msk [vmem:[%s278 + $0x38] sm:$0xff] %vm400, %v1990
      %2023 = vst.msk [vmem:[%s278 + $0x40] sm:$0xff] %vm400, %v1991
      %2024 = vst.msk [vmem:[%s278 + $0x48] sm:$0xff] %vm400, %v1992
      %2025 = vst.msk [vmem:[%s278 + $0x50] sm:$0xff] %vm400, %v1993
      %2026 = vst.msk [vmem:[%s278 + $0x58] sm:$0xff] %vm400, %v1994
      %2027 = vst.msk [vmem:[%s278 + $0x60] sm:$0xff] %vm400, %v1995
      %2028 = vst.msk [vmem:[%s278 + $0x68] sm:$0xff] %vm400, %v1996
      %2029 = vst.msk [vmem:[%s278 + $0x70] sm:$0xff] %vm400, %v1997
      %2030 = vst.msk [vmem:[%s278 + $0x78] sm:$0xff] %vm400, %v1998
      %2031 = vst.msk [vmem:[%s278 + $0x80] sm:$0xff] %vm400, %v1999
      %2032 = vst.msk [vmem:[%s278 + $0x88] sm:$0xff] %vm400, %v2000
      %2033 = vst.msk [vmem:[%s278 + $0x90] sm:$0xff] %vm400, %v2001
      %2034 = vst.msk [vmem:[%s278 + $0x98] sm:$0xff] %vm400, %v2002
      %2035 = vst.msk [vmem:[%s278 + $0xa0] sm:$0xff] %vm400, %v2003
      %2036 = vst.msk [vmem:[%s278 + $0xa8] sm:$0xff] %vm400, %v2004
      %2037 = vst.msk [vmem:[%s278 + $0xb0] sm:$0xff] %vm400, %v2005
      %2038 = vst.msk [vmem:[%s278 + $0xb8] sm:$0xff] %vm400, %v2006
      %2039 = vst.msk [vmem:[%s278 + $0xc0] sm:$0xff] %vm400, %v2007
      %2040 = vst.msk [vmem:[%s278 + $0xc8] sm:$0xff] %vm400, %v2008
      %2041 = vst.msk [vmem:[%s278 + $0xd0] sm:$0xff] %vm400, %v2009
      %2042 = vst.msk [vmem:[%s278 + $0xd8] sm:$0xff] %vm400, %v2010
      %2043 = vst.msk [vmem:[%s278 + $0xe0] sm:$0xff] %vm400, %v2011
      %2044 = vst.msk [vmem:[%s278 + $0xe8] sm:$0xff] %vm400, %v2012
      %2045 = vst.msk [vmem:[%s278 + $0xf0] sm:$0xff] %vm400, %v2013
      %2046 = vst.msk [vmem:[%s278 + $0xf8] sm:$0xff] %vm400, %v2014
      %p2047 = scmp.lt.s32.totalorder %s18, 1
      %s2048 = scalar_select %p2047, %s18, 1
      %s2049 = smul.addr %s2048, 32
      %s2050 = smul.addr %s2049, 8
      %s2051 = scalar_lea.vmem %s7, %s2050
      // Predicated region
      $region49: #{shufflenet_unit_forward.1} parent=47 // pred_check
        %p2052 = pneg %p188
      $region50: #{shufflenet_unit_forward.1} parent=47 // pred_check_branch
        %2054 = sbr.rel (%p2052) target = $region52
      $region51: #{shufflenet_unit_forward.1} parent=47 // pred_region
        _
      $region52: #{shufflenet_unit_forward.1} parent=47 // pred_fallthru
        _
    $region48: #{shufflenet_unit_forward.1} parent=5 // pred_fallthru
      _
    %p2055 = scmp.le.s32.totalorder 2, %s13
    // Predicated region
    $region53: #{shufflenet_unit_forward.1} parent=5 // pred_check
      %p2056 = pneg %p2055
    $region54: #{shufflenet_unit_forward.1} parent=5 // pred_check_branch
      %2058 = sbr.rel (%p2056) target = $region56
    $region55: #{shufflenet_unit_forward.1} parent=5 // pred_region
      %s2059 = ssub.s32 %s13, 2
      // Predicated region
      $region57: #{shufflenet_unit_forward.1} parent=55 // pred_check
        %p2060 = pneg %p194
      $region58: #{shufflenet_unit_forward.1} parent=55 // pred_check_branch
        %2062 = sbr.rel (%p2060) target = $region60
      $region59: #{shufflenet_unit_forward.1} parent=55 // pred_region
        %p2063 = scmp.lt.s32.totalorder %s19, 1
        %s2064 = scalar_select %p2063, %s19, 1
        %s2065 = smul.addr %s2064, 32
        %s2066 = smul.addr %s2065, 8
        %s2067 = scalar_lea.vmem %s7, %s2066
      $region60: #{shufflenet_unit_forward.1} parent=55 // pred_fallthru
        _
    $region56: #{shufflenet_unit_forward.1} parent=5 // pred_fallthru
      _
  $region6: #{shufflenet_unit_forward.1} parent=0 // loop_footer
    %s17 = sadd.s32 1, %s13
  $region7: #{shufflenet_unit_forward.1} parent=0 // loop_footer_branch
    %12 = sbr.rel target = $region3
  $region8: #{shufflenet_unit_forward.1} parent=0 // loop_exit
    _

</llo_original>
